<compile_context>
chip_gen: v6e
topology: v6e:2x2x1
jax: 0.10.0
libtpu: 0.0.40
codegen_flags: <defaults>
</compile_context>

<pallas_src>
import itertools
import numpy as np
import jax
import jax.numpy as jnp
from jax.experimental import pallas as pl
from jax.experimental.pallas import tpu as pltpu

LEAKY_SLOPE = 0.01
BN_EPS = 0.001


def _leaky(x):
    return jnp.where(x > 0, x, LEAKY_SLOPE * x)


def _round_up(n, m):
    return ((n + m - 1) // m) * m


# ------------------------------ static plan ---------------------------------

def _build_plan(image_shape, n_channels, k, s, batch):
    """Static geometry (offsets, widths, selection matrix) for the fused kernel."""
    assert len(n_channels) == 3, "fused kernel is specialised to 2 conv layers"
    D, H, W = image_shape
    assert D % s == 0 and H % s == 0 and W % s == 0
    cin0 = n_channels[0]

    def osz(n):
        return (n - k) // s + 1

    v1 = (osz(D), osz(H), osz(W))                    # conv1 valid spatial
    v2 = tuple(osz(n) for n in v1)                   # conv2 valid spatial

    # layer 1: parity-split half-index layout of the input
    e1 = (D // s, H // s, W // s)                    # half-index extents
    st1 = (e1[1] * e1[2], e1[2], 1)                  # (d, h, w) strides
    bstride = e1[0] * e1[1] * e1[2]                  # per-batch column stride
    n_ext = batch * bstride                          # real columns in that layout

    # no wrap / no zero-pad bleed into the columns conv2 actually reads
    for i in range(3):
        assert s * (v2[i] - 1) + (k - 1) + (k - 1) // s < e1[i]

    taps1 = []                                       # (row_offset, col_offset)
    for kd, kh, kw in itertools.product(range(k), repeat=3):
        pidx = (kd % s) * s * s + (kh % s) * s + (kw % s)
        off = (kd // s) * st1[0] + (kh // s) * st1[1] + (kw // s) * st1[2]
        taps1.append((pidx * cin0, off))
    max_off1 = max(o for _, o in taps1)

    # layer 2: shifted slices of act1 + 0/1 selection matmul
    taps2 = [kd * st1[0] + kh * st1[1] + kw * st1[2]
             for kd, kh, kw in itertools.product(range(k), repeat=3)]
    max_off2 = max(taps2)

    n_sp = v2[0] * v2[1] * v2[2]
    sel, max_beta = [], 0
    for b in range(batch):
        for i, (d2, h2, w2) in enumerate(
                itertools.product(range(v2[0]), range(v2[1]), range(v2[2]))):
            beta = b * bstride + s * d2 * st1[0] + s * h2 * st1[1] + s * w2 * st1[2]
            sel.append((beta, i * batch + b))
            max_beta = max(max_beta, beta)

    ow = _round_up(max_beta + 1, 8)                  # width of shifted act1 slices
    a1w = _round_up(max_off2 + ow, 8)                # width of act1 kept in VMEM
    yw = _round_up(max_off1 + a1w, 128)              # padded input layout width

    s2 = np.zeros((ow, n_sp * batch), np.float32)
    for r, c in sel:
        s2[r, c] = 1.0

    return dict(cin0=cin0, c2=n_channels[2], batch=batch, e1=e1, n_ext=n_ext,
                taps1=taps1, taps2=taps2, ow=ow, a1w=a1w, yw=yw,
                n_sp=n_sp, s2=s2)


# ------------------------------ fused kernel --------------------------------

def _make_fused_kernel(plan, n_units, hpu):
    cin0, a1w, ow = plan["cin0"], plan["a1w"], plan["ow"]
    taps1, taps2 = plan["taps1"], plan["taps2"]
    n_sp, batch = plan["n_sp"], plan["batch"]

    def kernel(y_ref, w1m_ref, c1_ref, w2m_ref, s2_ref, c2_ref,
               w1d_ref, b1_ref, w2d_ref, b2_ref, o_ref):
        yv = y_ref[...]                                            # (s^3*Cin, YW) f32

        # conv1: patches assembled in VMEM (contiguous slices), one MXU matmul.
        # BN scale is pre-folded into w1m host-side -> only bias + LeakyReLU here.
        p1 = jnp.concatenate(
            [yv[r:r + cin0, c:c + a1w] for (r, c) in taps1], axis=0)
        o1 = jnp.dot(w1m_ref[...], p1.astype(jnp.bfloat16),
                     preferred_element_type=jnp.float32)           # (C1, A1W)
        act1 = _leaky(o1 + c1_ref[...])

        # conv2: shifted slices -> channel reduction FIRST (C2 x K2 matmul on the
        # wide operand), then the small 0/1 selection matmul picks the stride-2
        # output columns.  Matmul associativity keeps the result identical.
        osh = jnp.concatenate([act1[:, c:c + ow] for c in taps2], axis=0)
        t2 = jnp.dot(w2m_ref[...], osh.astype(jnp.bfloat16),
                     preferred_element_type=jnp.float32)           # (C2, OW)
        o2 = jnp.dot(t2.astype(jnp.bfloat16), s2_ref[...],
                     preferred_element_type=jnp.float32)           # (C2, n_sp*B)
        act2 = _leaky(o2 + c2_ref[...])

        # flatten to (features, batch); feature order folded into w1d host-side
        xd = jnp.concatenate(
            [act2[:, sp * batch:(sp + 1) * batch] for sp in range(n_sp)], axis=0)

        # ordinal dense head: one batched matmul + per-unit block reduction
        h = jnp.dot(w1d_ref[...], xd.astype(jnp.bfloat16),
                    preferred_element_type=jnp.float32)            # (U*hpu, B)
        h = _leaky(h + b1_ref[...])                                # dropout = identity (eval)
        m = h * w2d_ref[...]
        logits = jnp.concatenate(
            [jnp.sum(m[u * hpu:(u + 1) * hpu, :], axis=0, keepdims=True)
             for u in range(n_units)], axis=0) + b2_ref[...]       # (U, B)
        o_ref[...] = jax.nn.sigmoid(logits)

    return kernel


# ------------------------------ host wrapper --------------------------------

def ordinal_net_forward(x_ncdhw, params, image_shape, n_channels, kernel_size, stride):
    """Full OrdinalNet.forward.  Input is PyTorch-style NCDHW; returns a list
    of (B,) arrays (one per ordinal unit), like the PyTorch module."""
    B = x_ncdhw.shape[0]
    s, k = stride, kernel_size
    cin0, _, c2 = n_channels
    plan = _build_plan(image_shape, n_channels, k, s, B)
    e1, yw, n_sp = plan["e1"], plan["yw"], plan["n_sp"]

    (cw1, cb1, g1, be1, m1, va1) = params["conv_layers"][0]
    (cw2, cb2, g2, be2, m2, va2) = params["conv_layers"][1]

    # input -> parity-split half-index 2-D layout (layout plumbing, no 27x blowup)
    xr = x_ncdhw.reshape(B, cin0, e1[0], s, e1[1], s, e1[2], s)
    yt = jnp.transpose(xr, (3, 5, 7, 1, 0, 2, 4, 6))   # (pd,ph,pw,cin, b,dh,hh,wh)
    y2d = yt.reshape(s ** 3 * cin0, B * e1[0] * e1[1] * e1[2]).astype(jnp.float32)
    y2d = jnp.pad(y2d, ((0, 0), (0, yw - y2d.shape[1])))

    def conv_mat(w):                                   # (Cout, Cin, k,k,k) -> (Cout, k^3*Cin)
        return jnp.transpose(w, (0, 2, 3, 4, 1)).reshape(w.shape[0], -1)

    def bn_fold(wmat, bias, g, beta, mean, var):
        """Fold conv bias + eval-mode BN into (scaled weight, channel offset)."""
        a = g / jnp.sqrt(var + BN_EPS)                               # (Cout,)
        wm = (wmat * a.reshape(-1, 1)).astype(jnp.bfloat16)          # scale rows
        c = (beta - mean * a + bias * a).reshape(-1, 1).astype(jnp.float32)
        return wm, c

    w1m, c1c = bn_fold(conv_mat(cw1), cb1, g1, be1, m1, va1)
    w2m, c2c = bn_fold(conv_mat(cw2), cb2, g2, be2, m2, va2)
    s2 = jnp.asarray(plan["s2"], jnp.bfloat16)

    # dense head weights with the NCDHW flatten folded in (feature order (sp, c2))
    U, F, hpu = params["w1"].shape
    w1r = params["w1"].reshape(U, c2, n_sp, hpu)
    w1d = jnp.transpose(w1r, (0, 3, 2, 1)).reshape(U * hpu, n_sp * c2).astype(jnp.bfloat16)
    b1d = params["b1"].reshape(U * hpu, 1).astype(jnp.float32)
    w2d = params["w2"].reshape(U * hpu, 1).astype(jnp.float32)
    b2d = params["b2"].reshape(U, 1).astype(jnp.float32)

    kernel = _make_fused_kernel(plan, U, hpu)
    args = (y2d, w1m, c1c, w2m, s2, c2c, w1d, b1d, w2d, b2d)
    out = pl.pallas_call(
        kernel,
        out_shape=jax.ShapeDtypeStruct((U, B), jnp.float32),
        grid=(1,),
        in_specs=[pl.BlockSpec(a.shape, lambda i: (0, 0)) for a in args],
        out_specs=pl.BlockSpec((U, B), lambda i: (0, 0)),
        compiler_params=pltpu.CompilerParams(dimension_semantics=("arbitrary",)),
    )(*args)
    return [out[u] for u in range(U)]


# ------------------------- pure-JAX reference -------------------------------

def reference_forward(x_ncdhw, params, stride):
    x = x_ncdhw
    for (w, b, g, beta, m, v) in params["conv_layers"]:
        y = jax.lax.conv_general_dilated(
            x, w, (stride,) * 3, "VALID",
            dimension_numbers=("NCDHW", "OIDHW", "NCDHW"))
        y = y + b[None, :, None, None, None]
        y = (y - m[None, :, None, None, None]) / jnp.sqrt(
            v[None, :, None, None, None] + BN_EPS)
        y = y * g[None, :, None, None, None] + beta[None, :, None, None, None]
        x = _leaky(y)
    x = x.reshape(x.shape[0], -1)
    outs = []
    for u in range(params["w1"].shape[0]):
        h = _leaky(x @ params["w1"][u] + params["b1"][u][None, :])
        outs.append(jax.nn.sigmoid(h @ params["w2"][u] + params["b2"][u][None, :])[:, 0])
    return outs


# --------------------------------- main --------------------------------------

if __name__ == "__main__":
    image_shape = (12, 12, 12)
    n_channels = [2, 4, 8]
    kernel_size = 3
    stride = 2
    hidden_size = 32
    n_classes = 4
    batch = 2

    n_units = n_classes - 1
    hpu = int(np.round(hidden_size / (n_classes - 1)))   # hidden_size_per_unit

    key = jax.random.PRNGKey(0)
    keys = iter(jax.random.split(key, 32))

    conv_layers = []
    shape = np.array(image_shape)
    for cin, cout in zip(n_channels[:-1], n_channels[1:]):
        w = 0.1 * jax.random.normal(next(keys), (cout, cin, kernel_size,
                                                 kernel_size, kernel_size), jnp.float32)
        b = 0.05 * jax.random.normal(next(keys), (cout,), jnp.float32)
        gamma = 1.0 + 0.1 * jax.random.normal(next(keys), (cout,), jnp.float32)
        beta = 0.1 * jax.random.normal(next(keys), (cout,), jnp.float32)
        mean = 0.1 * jax.random.normal(next(keys), (cout,), jnp.float32)
        var = 1.0 + 0.1 * jnp.abs(jax.random.normal(next(keys), (cout,), jnp.float32))
        conv_layers.append((w, b, gamma, beta, mean, var))
        shape = np.floor((shape - (kernel_size - 1) - 1) / stride + 1)
    conv_output_size = n_channels[-1] * int(np.prod(shape))

    params = {
        "conv_layers": conv_layers,
        "w1": 0.1 * jax.random.normal(next(keys), (n_units, conv_output_size, hpu), jnp.float32),
        "b1": 0.05 * jax.random.normal(next(keys), (n_units, hpu), jnp.float32),
        "w2": 0.1 * jax.random.normal(next(keys), (n_units, hpu, 1), jnp.float32),
        "b2": 0.05 * jax.random.normal(next(keys), (n_units, 1), jnp.float32),
    }

    # PyTorch-style NCDHW input
    x = jax.random.normal(next(keys), (batch, n_channels[0], *image_shape), jnp.float32)

    outs = ordinal_net_forward(x, params, image_shape, n_channels, kernel_size, stride)
    outs = [jax.block_until_ready(o) for o in outs]

    refs = reference_forward(x, params, stride)
    for o, r in zip(outs, refs):
        np.testing.assert_allclose(np.asarray(o), np.asarray(r), atol=2e-2, rtol=2e-2)

    assert len(outs) == n_units and all(o.shape == (batch,) for o in outs)
    print("KERNEL_OK")
</pallas_src>

<mosaic_0001>
module attributes {stable_mosaic.version = 11 : i64} {
  func.func @kernel(%arg0: i32, %arg1: memref<16x512xf32, #tpu.memory_space<vmem>>, %arg2: memref<4x54xbf16, #tpu.memory_space<vmem>>, %arg3: memref<4x1xf32, #tpu.memory_space<vmem>>, %arg4: memref<8x108xbf16, #tpu.memory_space<vmem>>, %arg5: memref<304x16xbf16, #tpu.memory_space<vmem>>, %arg6: memref<8x1xf32, #tpu.memory_space<vmem>>, %arg7: memref<33x64xbf16, #tpu.memory_space<vmem>>, %arg8: memref<33x1xf32, #tpu.memory_space<vmem>>, %arg9: memref<33x1xf32, #tpu.memory_space<vmem>>, %arg10: memref<3x1xf32, #tpu.memory_space<vmem>>, %arg11: memref<3x2xf32, #tpu.memory_space<vmem>>) attributes {dimension_semantics = [#tpu.dimension_semantics<arbitrary>], iteration_bounds = array<i64: 1>, scalar_prefetch = 0 : i64, scratch_operands = 0 : i64, tpu.core_type = #tpu.core_type<tc>, window_params = [{pipeline_mode = #tpu.pipeline_mode<synchronous>, transform_indices = @transform_0, window_bounds = array<i64: 16, 512>}, {pipeline_mode = #tpu.pipeline_mode<synchronous>, transform_indices = @transform_1, window_bounds = array<i64: 4, 54>}, {pipeline_mode = #tpu.pipeline_mode<synchronous>, transform_indices = @transform_2, window_bounds = array<i64: 4, 1>}, {pipeline_mode = #tpu.pipeline_mode<synchronous>, transform_indices = @transform_3, window_bounds = array<i64: 8, 108>}, {pipeline_mode = #tpu.pipeline_mode<synchronous>, transform_indices = @transform_4, window_bounds = array<i64: 304, 16>}, {pipeline_mode = #tpu.pipeline_mode<synchronous>, transform_indices = @transform_5, window_bounds = array<i64: 8, 1>}, {pipeline_mode = #tpu.pipeline_mode<synchronous>, transform_indices = @transform_6, window_bounds = array<i64: 33, 64>}, {pipeline_mode = #tpu.pipeline_mode<synchronous>, transform_indices = @transform_7, window_bounds = array<i64: 33, 1>}, {pipeline_mode = #tpu.pipeline_mode<synchronous>, transform_indices = @transform_8, window_bounds = array<i64: 33, 1>}, {pipeline_mode = #tpu.pipeline_mode<synchronous>, transform_indices = @transform_9, window_bounds = array<i64: 3, 1>}, {pipeline_mode = #tpu.pipeline_mode<synchronous>, transform_indices = @transform_10, window_bounds = array<i64: 3, 2>}]} {
    %c0 = arith.constant 0 : index
    %c0_0 = arith.constant 0 : index
    %0 = vector.load %arg1[%c0, %c0_0] : memref<16x512xf32, #tpu.memory_space<vmem>>, vector<16x512xf32>
    %1 = vector.extract_strided_slice %0 {offsets = [0, 0], sizes = [2, 392], strides = [1, 1]} : vector<16x512xf32> to vector<2x392xf32>
    %2 = vector.extract_strided_slice %0 {offsets = [2, 0], sizes = [2, 392], strides = [1, 1]} : vector<16x512xf32> to vector<2x392xf32>
    %3 = vector.extract_strided_slice %0 {offsets = [0, 1], sizes = [2, 392], strides = [1, 1]} : vector<16x512xf32> to vector<2x392xf32>
    %4 = vector.extract_strided_slice %0 {offsets = [4, 0], sizes = [2, 392], strides = [1, 1]} : vector<16x512xf32> to vector<2x392xf32>
    %5 = vector.extract_strided_slice %0 {offsets = [6, 0], sizes = [2, 392], strides = [1, 1]} : vector<16x512xf32> to vector<2x392xf32>
    %6 = vector.extract_strided_slice %0 {offsets = [4, 1], sizes = [2, 392], strides = [1, 1]} : vector<16x512xf32> to vector<2x392xf32>
    %7 = vector.extract_strided_slice %0 {offsets = [0, 6], sizes = [2, 392], strides = [1, 1]} : vector<16x512xf32> to vector<2x392xf32>
    %8 = vector.extract_strided_slice %0 {offsets = [2, 6], sizes = [2, 392], strides = [1, 1]} : vector<16x512xf32> to vector<2x392xf32>
    %9 = vector.extract_strided_slice %0 {offsets = [0, 7], sizes = [2, 392], strides = [1, 1]} : vector<16x512xf32> to vector<2x392xf32>
    %10 = vector.extract_strided_slice %0 {offsets = [8, 0], sizes = [2, 392], strides = [1, 1]} : vector<16x512xf32> to vector<2x392xf32>
    %11 = vector.extract_strided_slice %0 {offsets = [10, 0], sizes = [2, 392], strides = [1, 1]} : vector<16x512xf32> to vector<2x392xf32>
    %12 = vector.extract_strided_slice %0 {offsets = [8, 1], sizes = [2, 392], strides = [1, 1]} : vector<16x512xf32> to vector<2x392xf32>
    %13 = vector.extract_strided_slice %0 {offsets = [12, 0], sizes = [2, 392], strides = [1, 1]} : vector<16x512xf32> to vector<2x392xf32>
    %14 = vector.extract_strided_slice %0 {offsets = [14, 0], sizes = [2, 392], strides = [1, 1]} : vector<16x512xf32> to vector<2x392xf32>
    %15 = vector.extract_strided_slice %0 {offsets = [12, 1], sizes = [2, 392], strides = [1, 1]} : vector<16x512xf32> to vector<2x392xf32>
    %16 = vector.extract_strided_slice %0 {offsets = [8, 6], sizes = [2, 392], strides = [1, 1]} : vector<16x512xf32> to vector<2x392xf32>
    %17 = vector.extract_strided_slice %0 {offsets = [10, 6], sizes = [2, 392], strides = [1, 1]} : vector<16x512xf32> to vector<2x392xf32>
    %18 = vector.extract_strided_slice %0 {offsets = [8, 7], sizes = [2, 392], strides = [1, 1]} : vector<16x512xf32> to vector<2x392xf32>
    %19 = vector.extract_strided_slice %0 {offsets = [0, 36], sizes = [2, 392], strides = [1, 1]} : vector<16x512xf32> to vector<2x392xf32>
    %20 = vector.extract_strided_slice %0 {offsets = [2, 36], sizes = [2, 392], strides = [1, 1]} : vector<16x512xf32> to vector<2x392xf32>
    %21 = vector.extract_strided_slice %0 {offsets = [0, 37], sizes = [2, 392], strides = [1, 1]} : vector<16x512xf32> to vector<2x392xf32>
    %22 = vector.extract_strided_slice %0 {offsets = [4, 36], sizes = [2, 392], strides = [1, 1]} : vector<16x512xf32> to vector<2x392xf32>
    %23 = vector.extract_strided_slice %0 {offsets = [6, 36], sizes = [2, 392], strides = [1, 1]} : vector<16x512xf32> to vector<2x392xf32>
    %24 = vector.extract_strided_slice %0 {offsets = [4, 37], sizes = [2, 392], strides = [1, 1]} : vector<16x512xf32> to vector<2x392xf32>
    %25 = vector.extract_strided_slice %0 {offsets = [0, 42], sizes = [2, 392], strides = [1, 1]} : vector<16x512xf32> to vector<2x392xf32>
    %26 = vector.extract_strided_slice %0 {offsets = [2, 42], sizes = [2, 392], strides = [1, 1]} : vector<16x512xf32> to vector<2x392xf32>
    %27 = vector.extract_strided_slice %0 {offsets = [0, 43], sizes = [2, 392], strides = [1, 1]} : vector<16x512xf32> to vector<2x392xf32>
    %28 = tpu.concatenate %1, %2, %3, %4, %5, %6, %7, %8, %9, %10, %11, %12, %13, %14, %15, %16 in 0 : vector<2x392xf32>, vector<2x392xf32>, vector<2x392xf32>, vector<2x392xf32>, vector<2x392xf32>, vector<2x392xf32>, vector<2x392xf32>, vector<2x392xf32>, vector<2x392xf32>, vector<2x392xf32>, vector<2x392xf32>, vector<2x392xf32>, vector<2x392xf32>, vector<2x392xf32>, vector<2x392xf32>, vector<2x392xf32> -> vector<32x392xf32>
    %29 = tpu.concatenate %17, %18, %19, %20, %21, %22, %23, %24, %25, %26, %27 in 0 : vector<2x392xf32>, vector<2x392xf32>, vector<2x392xf32>, vector<2x392xf32>, vector<2x392xf32>, vector<2x392xf32>, vector<2x392xf32>, vector<2x392xf32>, vector<2x392xf32>, vector<2x392xf32>, vector<2x392xf32> -> vector<22x392xf32>
    %30 = tpu.concatenate %28, %29 in 0 : vector<32x392xf32>, vector<22x392xf32> -> vector<54x392xf32>
    %c0_1 = arith.constant 0 : index
    %c0_2 = arith.constant 0 : index
    %31 = vector.load %arg2[%c0_1, %c0_2] : memref<4x54xbf16, #tpu.memory_space<vmem>>, vector<4x54xbf16>
    %32 = arith.truncf %30 : vector<54x392xf32> to vector<54x392xbf16>
    %cst = arith.constant dense<0.000000e+00> : vector<4x392xf32>
    %33 = tpu.matmul %31, %32, %cst {dimension_numbers = #tpu.dot_dimension_numbers<[1], [0], [0], [1], [0, 0, 1, 1], [], []>} : vector<4x54xbf16>, vector<54x392xbf16>, vector<4x392xf32> -> vector<4x392xf32>
    %c0_3 = arith.constant 0 : index
    %c0_4 = arith.constant 0 : index
    %34 = vector.load %arg3[%c0_3, %c0_4] : memref<4x1xf32, #tpu.memory_space<vmem>>, vector<4x1xf32>
    %35 = vector.broadcast %34 : vector<4x1xf32> to vector<4x392xf32>
    %36 = arith.addf %33, %35 : vector<4x392xf32>
    %cst_5 = arith.constant 0.000000e+00 : f32
    %37 = vector.broadcast %cst_5 : f32 to vector<4x392xf32>
    %38 = arith.cmpf ogt, %36, %37 : vector<4x392xf32>
    %cst_6 = arith.constant 0.00999999977 : f32
    %39 = vector.broadcast %cst_6 : f32 to vector<4x392xf32>
    %40 = arith.mulf %39, %36 : vector<4x392xf32>
    %41 = arith.select %38, %36, %40 : vector<4x392xi1>, vector<4x392xf32>
    %42 = vector.extract_strided_slice %41 {offsets = [0, 0], sizes = [4, 304], strides = [1, 1]} : vector<4x392xf32> to vector<4x304xf32>
    %43 = vector.extract_strided_slice %41 {offsets = [0, 1], sizes = [4, 304], strides = [1, 1]} : vector<4x392xf32> to vector<4x304xf32>
    %44 = vector.extract_strided_slice %41 {offsets = [0, 2], sizes = [4, 304], strides = [1, 1]} : vector<4x392xf32> to vector<4x304xf32>
    %45 = vector.extract_strided_slice %41 {offsets = [0, 6], sizes = [4, 304], strides = [1, 1]} : vector<4x392xf32> to vector<4x304xf32>
    %46 = vector.extract_strided_slice %41 {offsets = [0, 7], sizes = [4, 304], strides = [1, 1]} : vector<4x392xf32> to vector<4x304xf32>
    %47 = vector.extract_strided_slice %41 {offsets = [0, 8], sizes = [4, 304], strides = [1, 1]} : vector<4x392xf32> to vector<4x304xf32>
    %48 = vector.extract_strided_slice %41 {offsets = [0, 12], sizes = [4, 304], strides = [1, 1]} : vector<4x392xf32> to vector<4x304xf32>
    %49 = vector.extract_strided_slice %41 {offsets = [0, 13], sizes = [4, 304], strides = [1, 1]} : vector<4x392xf32> to vector<4x304xf32>
    %50 = vector.extract_strided_slice %41 {offsets = [0, 14], sizes = [4, 304], strides = [1, 1]} : vector<4x392xf32> to vector<4x304xf32>
    %51 = vector.extract_strided_slice %41 {offsets = [0, 36], sizes = [4, 304], strides = [1, 1]} : vector<4x392xf32> to vector<4x304xf32>
    %52 = vector.extract_strided_slice %41 {offsets = [0, 37], sizes = [4, 304], strides = [1, 1]} : vector<4x392xf32> to vector<4x304xf32>
    %53 = vector.extract_strided_slice %41 {offsets = [0, 38], sizes = [4, 304], strides = [1, 1]} : vector<4x392xf32> to vector<4x304xf32>
    %54 = vector.extract_strided_slice %41 {offsets = [0, 42], sizes = [4, 304], strides = [1, 1]} : vector<4x392xf32> to vector<4x304xf32>
    %55 = vector.extract_strided_slice %41 {offsets = [0, 43], sizes = [4, 304], strides = [1, 1]} : vector<4x392xf32> to vector<4x304xf32>
    %56 = vector.extract_strided_slice %41 {offsets = [0, 44], sizes = [4, 304], strides = [1, 1]} : vector<4x392xf32> to vector<4x304xf32>
    %57 = vector.extract_strided_slice %41 {offsets = [0, 48], sizes = [4, 304], strides = [1, 1]} : vector<4x392xf32> to vector<4x304xf32>
    %58 = vector.extract_strided_slice %41 {offsets = [0, 49], sizes = [4, 304], strides = [1, 1]} : vector<4x392xf32> to vector<4x304xf32>
    %59 = vector.extract_strided_slice %41 {offsets = [0, 50], sizes = [4, 304], strides = [1, 1]} : vector<4x392xf32> to vector<4x304xf32>
    %60 = vector.extract_strided_slice %41 {offsets = [0, 72], sizes = [4, 304], strides = [1, 1]} : vector<4x392xf32> to vector<4x304xf32>
    %61 = vector.extract_strided_slice %41 {offsets = [0, 73], sizes = [4, 304], strides = [1, 1]} : vector<4x392xf32> to vector<4x304xf32>
    %62 = vector.extract_strided_slice %41 {offsets = [0, 74], sizes = [4, 304], strides = [1, 1]} : vector<4x392xf32> to vector<4x304xf32>
    %63 = vector.extract_strided_slice %41 {offsets = [0, 78], sizes = [4, 304], strides = [1, 1]} : vector<4x392xf32> to vector<4x304xf32>
    %64 = vector.extract_strided_slice %41 {offsets = [0, 79], sizes = [4, 304], strides = [1, 1]} : vector<4x392xf32> to vector<4x304xf32>
    %65 = vector.extract_strided_slice %41 {offsets = [0, 80], sizes = [4, 304], strides = [1, 1]} : vector<4x392xf32> to vector<4x304xf32>
    %66 = vector.extract_strided_slice %41 {offsets = [0, 84], sizes = [4, 304], strides = [1, 1]} : vector<4x392xf32> to vector<4x304xf32>
    %67 = vector.extract_strided_slice %41 {offsets = [0, 85], sizes = [4, 304], strides = [1, 1]} : vector<4x392xf32> to vector<4x304xf32>
    %68 = vector.extract_strided_slice %41 {offsets = [0, 86], sizes = [4, 304], strides = [1, 1]} : vector<4x392xf32> to vector<4x304xf32>
    %69 = tpu.concatenate %42, %43, %44, %45, %46, %47, %48, %49, %50, %51, %52, %53, %54, %55, %56, %57 in 0 : vector<4x304xf32>, vector<4x304xf32>, vector<4x304xf32>, vector<4x304xf32>, vector<4x304xf32>, vector<4x304xf32>, vector<4x304xf32>, vector<4x304xf32>, vector<4x304xf32>, vector<4x304xf32>, vector<4x304xf32>, vector<4x304xf32>, vector<4x304xf32>, vector<4x304xf32>, vector<4x304xf32>, vector<4x304xf32> -> vector<64x304xf32>
    %70 = tpu.concatenate %58, %59, %60, %61, %62, %63, %64, %65, %66, %67, %68 in 0 : vector<4x304xf32>, vector<4x304xf32>, vector<4x304xf32>, vector<4x304xf32>, vector<4x304xf32>, vector<4x304xf32>, vector<4x304xf32>, vector<4x304xf32>, vector<4x304xf32>, vector<4x304xf32>, vector<4x304xf32> -> vector<44x304xf32>
    %71 = tpu.concatenate %69, %70 in 0 : vector<64x304xf32>, vector<44x304xf32> -> vector<108x304xf32>
    %c0_7 = arith.constant 0 : index
    %c0_8 = arith.constant 0 : index
    %72 = vector.load %arg4[%c0_7, %c0_8] : memref<8x108xbf16, #tpu.memory_space<vmem>>, vector<8x108xbf16>
    %73 = arith.truncf %71 : vector<108x304xf32> to vector<108x304xbf16>
    %cst_9 = arith.constant dense<0.000000e+00> : vector<8x304xf32>
    %74 = tpu.matmul %72, %73, %cst_9 {dimension_numbers = #tpu.dot_dimension_numbers<[1], [0], [0], [1], [0, 0, 1, 1], [], []>} : vector<8x108xbf16>, vector<108x304xbf16>, vector<8x304xf32> -> vector<8x304xf32>
    %75 = arith.truncf %74 : vector<8x304xf32> to vector<8x304xbf16>
    %c0_10 = arith.constant 0 : index
    %c0_11 = arith.constant 0 : index
    %76 = vector.load %arg5[%c0_10, %c0_11] : memref<304x16xbf16, #tpu.memory_space<vmem>>, vector<304x16xbf16>
    %cst_12 = arith.constant dense<0.000000e+00> : vector<8x16xf32>
    %77 = tpu.matmul %75, %76, %cst_12 {dimension_numbers = #tpu.dot_dimension_numbers<[1], [0], [0], [1], [0, 0, 1, 1], [], []>} : vector<8x304xbf16>, vector<304x16xbf16>, vector<8x16xf32> -> vector<8x16xf32>
    %c0_13 = arith.constant 0 : index
    %c0_14 = arith.constant 0 : index
    %78 = vector.load %arg6[%c0_13, %c0_14] : memref<8x1xf32, #tpu.memory_space<vmem>>, vector<8x1xf32>
    %79 = vector.broadcast %78 : vector<8x1xf32> to vector<8x16xf32>
    %80 = arith.addf %77, %79 : vector<8x16xf32>
    %cst_15 = arith.constant 0.000000e+00 : f32
    %81 = vector.broadcast %cst_15 : f32 to vector<8x16xf32>
    %82 = arith.cmpf ogt, %80, %81 : vector<8x16xf32>
    %cst_16 = arith.constant 0.00999999977 : f32
    %83 = vector.broadcast %cst_16 : f32 to vector<8x16xf32>
    %84 = arith.mulf %83, %80 : vector<8x16xf32>
    %85 = arith.select %82, %80, %84 : vector<8x16xi1>, vector<8x16xf32>
    %86 = vector.extract_strided_slice %85 {offsets = [0, 0], sizes = [8, 2], strides = [1, 1]} : vector<8x16xf32> to vector<8x2xf32>
    %87 = vector.extract_strided_slice %85 {offsets = [0, 2], sizes = [8, 2], strides = [1, 1]} : vector<8x16xf32> to vector<8x2xf32>
    %88 = vector.extract_strided_slice %85 {offsets = [0, 4], sizes = [8, 2], strides = [1, 1]} : vector<8x16xf32> to vector<8x2xf32>
    %89 = vector.extract_strided_slice %85 {offsets = [0, 6], sizes = [8, 2], strides = [1, 1]} : vector<8x16xf32> to vector<8x2xf32>
    %90 = vector.extract_strided_slice %85 {offsets = [0, 8], sizes = [8, 2], strides = [1, 1]} : vector<8x16xf32> to vector<8x2xf32>
    %91 = vector.extract_strided_slice %85 {offsets = [0, 10], sizes = [8, 2], strides = [1, 1]} : vector<8x16xf32> to vector<8x2xf32>
    %92 = vector.extract_strided_slice %85 {offsets = [0, 12], sizes = [8, 2], strides = [1, 1]} : vector<8x16xf32> to vector<8x2xf32>
    %93 = vector.extract_strided_slice %85 {offsets = [0, 14], sizes = [8, 2], strides = [1, 1]} : vector<8x16xf32> to vector<8x2xf32>
    %94 = tpu.concatenate %86, %87, %88, %89, %90, %91, %92, %93 in 0 : vector<8x2xf32>, vector<8x2xf32>, vector<8x2xf32>, vector<8x2xf32>, vector<8x2xf32>, vector<8x2xf32>, vector<8x2xf32>, vector<8x2xf32> -> vector<64x2xf32>
    %c0_17 = arith.constant 0 : index
    %c0_18 = arith.constant 0 : index
    %95 = vector.load %arg7[%c0_17, %c0_18] : memref<33x64xbf16, #tpu.memory_space<vmem>>, vector<33x64xbf16>
    %96 = arith.truncf %94 : vector<64x2xf32> to vector<64x2xbf16>
    %cst_19 = arith.constant dense<0.000000e+00> : vector<33x2xf32>
    %97 = tpu.matmul %95, %96, %cst_19 {dimension_numbers = #tpu.dot_dimension_numbers<[1], [0], [0], [1], [0, 0, 1, 1], [], []>} : vector<33x64xbf16>, vector<64x2xbf16>, vector<33x2xf32> -> vector<33x2xf32>
    %c0_20 = arith.constant 0 : index
    %c0_21 = arith.constant 0 : index
    %98 = vector.load %arg8[%c0_20, %c0_21] : memref<33x1xf32, #tpu.memory_space<vmem>>, vector<33x1xf32>
    %99 = vector.broadcast %98 : vector<33x1xf32> to vector<33x2xf32>
    %100 = arith.addf %97, %99 : vector<33x2xf32>
    %cst_22 = arith.constant 0.000000e+00 : f32
    %101 = vector.broadcast %cst_22 : f32 to vector<33x2xf32>
    %102 = arith.cmpf ogt, %100, %101 : vector<33x2xf32>
    %cst_23 = arith.constant 0.00999999977 : f32
    %103 = vector.broadcast %cst_23 : f32 to vector<33x2xf32>
    %104 = arith.mulf %103, %100 : vector<33x2xf32>
    %105 = arith.select %102, %100, %104 : vector<33x2xi1>, vector<33x2xf32>
    %c0_24 = arith.constant 0 : index
    %c0_25 = arith.constant 0 : index
    %106 = vector.load %arg9[%c0_24, %c0_25] : memref<33x1xf32, #tpu.memory_space<vmem>>, vector<33x1xf32>
    %107 = vector.broadcast %106 : vector<33x1xf32> to vector<33x2xf32>
    %108 = arith.mulf %105, %107 : vector<33x2xf32>
    %109 = vector.extract_strided_slice %108 {offsets = [0, 0], sizes = [11, 2], strides = [1, 1]} : vector<33x2xf32> to vector<11x2xf32>
    %cst_26 = arith.constant dense<0.000000e+00> : vector<2xf32>
    %110 = vector.multi_reduction <add>, %109, %cst_26 [0] : vector<11x2xf32> to vector<2xf32>
    %111 = vector.shape_cast %110 : vector<2xf32> to vector<1x2xf32>
    %112 = vector.extract_strided_slice %108 {offsets = [11, 0], sizes = [11, 2], strides = [1, 1]} : vector<33x2xf32> to vector<11x2xf32>
    %cst_27 = arith.constant dense<0.000000e+00> : vector<2xf32>
    %113 = vector.multi_reduction <add>, %112, %cst_27 [0] : vector<11x2xf32> to vector<2xf32>
    %114 = vector.shape_cast %113 : vector<2xf32> to vector<1x2xf32>
    %115 = vector.extract_strided_slice %108 {offsets = [22, 0], sizes = [11, 2], strides = [1, 1]} : vector<33x2xf32> to vector<11x2xf32>
    %cst_28 = arith.constant dense<0.000000e+00> : vector<2xf32>
    %116 = vector.multi_reduction <add>, %115, %cst_28 [0] : vector<11x2xf32> to vector<2xf32>
    %117 = vector.shape_cast %116 : vector<2xf32> to vector<1x2xf32>
    %118 = tpu.concatenate %111, %114, %117 in 0 : vector<1x2xf32>, vector<1x2xf32>, vector<1x2xf32> -> vector<3x2xf32>
    %c0_29 = arith.constant 0 : index
    %c0_30 = arith.constant 0 : index
    %119 = vector.load %arg10[%c0_29, %c0_30] : memref<3x1xf32, #tpu.memory_space<vmem>>, vector<3x1xf32>
    %120 = vector.broadcast %119 : vector<3x1xf32> to vector<3x2xf32>
    %121 = arith.addf %118, %120 : vector<3x2xf32>
    %122 = arith.negf %121 : vector<3x2xf32>
    %123 = math.exp %122 : vector<3x2xf32>
    %cst_31 = arith.constant 1.000000e+00 : f32
    %124 = vector.broadcast %cst_31 : f32 to vector<3x2xf32>
    %125 = arith.addf %124, %123 : vector<3x2xf32>
    %126 = arith.divf %124, %125 : vector<3x2xf32>
    %c0_32 = arith.constant 0 : index
    %c0_33 = arith.constant 0 : index
    %127 = vector.load %arg11[%c0_32, %c0_33] : memref<3x2xf32, #tpu.memory_space<vmem>>, vector<3x2xf32>
    tpu.vector_store %arg11[%c0_32, %c0_33], %126 {strides = array<i32>} : memref<3x2xf32, #tpu.memory_space<vmem>>, vector<3x2xf32>,
    return
  }
  func.func @transform_0(%arg0: i32) -> (i32, i32) {
    %c0_i32 = arith.constant 0 : i32
    %c0_i32_0 = arith.constant 0 : i32
    %c0_i32_1 = arith.constant 0 : i32
    return %c0_i32, %c0_i32_0 : i32, i32
  }
  func.func @transform_1(%arg0: i32) -> (i32, i32) {
    %c0_i32 = arith.constant 0 : i32
    %c0_i32_0 = arith.constant 0 : i32
    %c0_i32_1 = arith.constant 0 : i32
    return %c0_i32, %c0_i32_0 : i32, i32
  }
  func.func @transform_2(%arg0: i32) -> (i32, i32) {
    %c0_i32 = arith.constant 0 : i32
    %c0_i32_0 = arith.constant 0 : i32
    %c0_i32_1 = arith.constant 0 : i32
    return %c0_i32, %c0_i32_0 : i32, i32
  }
  func.func @transform_3(%arg0: i32) -> (i32, i32) {
    %c0_i32 = arith.constant 0 : i32
    %c0_i32_0 = arith.constant 0 : i32
    %c0_i32_1 = arith.constant 0 : i32
    return %c0_i32, %c0_i32_0 : i32, i32
  }
  func.func @transform_4(%arg0: i32) -> (i32, i32) {
    %c0_i32 = arith.constant 0 : i32
    %c0_i32_0 = arith.constant 0 : i32
    %c0_i32_1 = arith.constant 0 : i32
    return %c0_i32, %c0_i32_0 : i32, i32
  }
  func.func @transform_5(%arg0: i32) -> (i32, i32) {
    %c0_i32 = arith.constant 0 : i32
    %c0_i32_0 = arith.constant 0 : i32
    %c0_i32_1 = arith.constant 0 : i32
    return %c0_i32, %c0_i32_0 : i32, i32
  }
  func.func @transform_6(%arg0: i32) -> (i32, i32) {
    %c0_i32 = arith.constant 0 : i32
    %c0_i32_0 = arith.constant 0 : i32
    %c0_i32_1 = arith.constant 0 : i32
    return %c0_i32, %c0_i32_0 : i32, i32
  }
  func.func @transform_7(%arg0: i32) -> (i32, i32) {
    %c0_i32 = arith.constant 0 : i32
    %c0_i32_0 = arith.constant 0 : i32
    %c0_i32_1 = arith.constant 0 : i32
    return %c0_i32, %c0_i32_0 : i32, i32
  }
  func.func @transform_8(%arg0: i32) -> (i32, i32) {
    %c0_i32 = arith.constant 0 : i32
    %c0_i32_0 = arith.constant 0 : i32
    %c0_i32_1 = arith.constant 0 : i32
    return %c0_i32, %c0_i32_0 : i32, i32
  }
  func.func @transform_9(%arg0: i32) -> (i32, i32) {
    %c0_i32 = arith.constant 0 : i32
    %c0_i32_0 = arith.constant 0 : i32
    %c0_i32_1 = arith.constant 0 : i32
    return %c0_i32, %c0_i32_0 : i32, i32
  }
  func.func @transform_10(%arg0: i32) -> (i32, i32) {
    %c0_i32 = arith.constant 0 : i32
    %c0_i32_0 = arith.constant 0 : i32
    %c0_i32_1 = arith.constant 0 : i32
    return %c0_i32, %c0_i32_0 : i32, i32
  }
}

</mosaic_0001>

<llo_original>
// kernel: tpu_custom_call.1
$region0: #{tpu_custom_call.1}
  #allocation0 [shape = 'u32[]', space=smem, size = 0x4, offset = 0x4, fixed_abs, tag = 'smem constant byte address 0x4 - core index']
  #allocation1 [shape = 'u32[144,128]{1,0:T(1,128)}', space=vmem, size = 0x12000, scoped, tag = 'internal scratch']
  %s0 = inlined_call_operand.vmem [shape: f32[16,512], index: 0, kind: input, shape index: {}]
  %s1 = inlined_call_operand.vmem [shape: bf16[4,54], index: 1, kind: input, shape index: {}]
  %s2 = inlined_call_operand.vmem [shape: f32[4,1], index: 2, kind: input, shape index: {}]
  %s3 = inlined_call_operand.vmem [shape: bf16[8,108], index: 3, kind: input, shape index: {}]
  %s4 = inlined_call_operand.vmem [shape: bf16[304,16], index: 4, kind: input, shape index: {}]
  %s5 = inlined_call_operand.vmem [shape: f32[8,1], index: 5, kind: input, shape index: {}]
  %s6 = inlined_call_operand.vmem [shape: bf16[33,64], index: 6, kind: input, shape index: {}]
  %s7 = inlined_call_operand.vmem [shape: f32[33,1], index: 7, kind: input, shape index: {}]
  %s8 = inlined_call_operand.vmem [shape: f32[33,1], index: 8, kind: input, shape index: {}]
  %s9 = inlined_call_operand.vmem [shape: f32[3,1], index: 9, kind: input, shape index: {}]
  %s10 = inlined_call_operand.vmem [shape: f32[3,2], index: 10, kind: output, shape index: {}]
  %s11 = sld [smem:[#allocation0]]
  $region50: #{tpu_custom_call.1} parent=0
    _
  %s13 = ssub.s32 1, %s11
  %s14 = scalar_select 0, %s13, %s11
  // Predicated region
  $region2: #{tpu_custom_call.1} parent=0 // pred_check
    _
  $region3: #{tpu_custom_call.1} parent=0 // pred_check_branch
    %16 = sbr.rel (0) target = $region5
  $region4: #{tpu_custom_call.1} parent=0 // pred_region
    _
  $region5: #{tpu_custom_call.1} parent=0 // pred_fallthru
    _
  // Predicated region
  $region6: #{tpu_custom_call.1} parent=0 // pred_check
    _
  $region7: #{tpu_custom_call.1} parent=0 // pred_check_branch
    %18 = sbr.rel (0) target = $region9
  $region8: #{tpu_custom_call.1} parent=0 // pred_region
    _
  $region9: #{tpu_custom_call.1} parent=0 // pred_fallthru
    _
  // Predicated region
  $region10: #{tpu_custom_call.1} parent=0 // pred_check
    _
  $region11: #{tpu_custom_call.1} parent=0 // pred_check_branch
    %20 = sbr.rel (0) target = $region13
  $region12: #{tpu_custom_call.1} parent=0 // pred_region
    _
  $region13: #{tpu_custom_call.1} parent=0 // pred_fallthru
    _
  // Predicated region
  $region14: #{tpu_custom_call.1} parent=0 // pred_check
    _
  $region15: #{tpu_custom_call.1} parent=0 // pred_check_branch
    %22 = sbr.rel (0) target = $region17
  $region16: #{tpu_custom_call.1} parent=0 // pred_region
    _
  $region17: #{tpu_custom_call.1} parent=0 // pred_fallthru
    _
  // Predicated region
  $region18: #{tpu_custom_call.1} parent=0 // pred_check
    _
  $region19: #{tpu_custom_call.1} parent=0 // pred_check_branch
    %24 = sbr.rel (0) target = $region21
  $region20: #{tpu_custom_call.1} parent=0 // pred_region
    _
  $region21: #{tpu_custom_call.1} parent=0 // pred_fallthru
    _
  // Predicated region
  $region22: #{tpu_custom_call.1} parent=0 // pred_check
    _
  $region23: #{tpu_custom_call.1} parent=0 // pred_check_branch
    %26 = sbr.rel (0) target = $region25
  $region24: #{tpu_custom_call.1} parent=0 // pred_region
    _
  $region25: #{tpu_custom_call.1} parent=0 // pred_fallthru
    _
  // Predicated region
  $region26: #{tpu_custom_call.1} parent=0 // pred_check
    _
  $region27: #{tpu_custom_call.1} parent=0 // pred_check_branch
    %28 = sbr.rel (0) target = $region29
  $region28: #{tpu_custom_call.1} parent=0 // pred_region
    _
  $region29: #{tpu_custom_call.1} parent=0 // pred_fallthru
    _
  // Predicated region
  $region30: #{tpu_custom_call.1} parent=0 // pred_check
    _
  $region31: #{tpu_custom_call.1} parent=0 // pred_check_branch
    %30 = sbr.rel (0) target = $region33
  $region32: #{tpu_custom_call.1} parent=0 // pred_region
    _
  $region33: #{tpu_custom_call.1} parent=0 // pred_fallthru
    _
  // Predicated region
  $region34: #{tpu_custom_call.1} parent=0 // pred_check
    _
  $region35: #{tpu_custom_call.1} parent=0 // pred_check_branch
    %32 = sbr.rel (0) target = $region37
  $region36: #{tpu_custom_call.1} parent=0 // pred_region
    _
  $region37: #{tpu_custom_call.1} parent=0 // pred_fallthru
    _
  // Predicated region
  $region38: #{tpu_custom_call.1} parent=0 // pred_check
    _
  $region39: #{tpu_custom_call.1} parent=0 // pred_check_branch
    %34 = sbr.rel (0) target = $region41
  $region40: #{tpu_custom_call.1} parent=0 // pred_region
    _
  $region41: #{tpu_custom_call.1} parent=0 // pred_fallthru
    _
  %v36 = vld [vmem:[%s0] sm:$0xff]
  %v37 = vld [vmem:[%s0 + $0x8] sm:$0xff]
  %v38 = vld [vmem:[%s0 + $0x10] sm:$0xff]
  %v39 = vld [vmem:[%s0 + $0x18] sm:$0xff]
  %v40 = vld [vmem:[%s0 + $0x20] sm:$0xff]
  %v41 = vld [vmem:[%s0 + $0x28] sm:$0xff]
  %v42 = vld [vmem:[%s0 + $0x30] sm:$0xff]
  %v43 = vld [vmem:[%s0 + $0x38] sm:$0xff]
  %v48 = vrot.slane %v36, 4
  %v49 = vrot.slane %v37, 4
  %v50 = vrot.slane %v38, 4
  %v51 = vrot.slane %v39, 4
  %52 = vrot.lane.b32.xlu0 %v48, 127
  %v53 = vpop.permute.xlu0 %52
  %54 = vrot.lane.b32.xlu0 %v49, 127
  %v55 = vpop.permute.xlu0 %54
  %56 = vrot.lane.b32.xlu0 %v50, 127
  %v57 = vpop.permute.xlu0 %56
  %58 = vrot.lane.b32.xlu0 %v51, 127
  %v59 = vpop.permute.xlu0 %58
  %vm60 = vcmask 1039360
  %v61 = vsel %vm60, %v53, %v55
  %v62 = vsel %vm60, %v55, %v57
  %v63 = vsel %vm60, %v57, %v59
  %v68 = vrot.slane %v36, 6
  %v69 = vrot.slane %v37, 6
  %v70 = vrot.slane %v38, 6
  %v71 = vrot.slane %v39, 6
  %v76 = vrot.slane %v36, 2
  %v77 = vrot.slane %v37, 2
  %v78 = vrot.slane %v38, 2
  %v79 = vrot.slane %v39, 2
  %80 = vrot.lane.b32.xlu0 %v76, 127
  %v81 = vpop.permute.xlu0 %80
  %82 = vrot.lane.b32.xlu0 %v77, 127
  %v83 = vpop.permute.xlu0 %82
  %84 = vrot.lane.b32.xlu0 %v78, 127
  %v85 = vpop.permute.xlu0 %84
  %86 = vrot.lane.b32.xlu0 %v79, 127
  %v87 = vpop.permute.xlu0 %86
  %v88 = vsel %vm60, %v81, %v83
  %v89 = vsel %vm60, %v83, %v85
  %v90 = vsel %vm60, %v85, %v87
  %95 = vrot.lane.b32.xlu0 %v48, 122
  %v96 = vpop.permute.xlu0 %95
  %97 = vrot.lane.b32.xlu0 %v49, 122
  %v98 = vpop.permute.xlu0 %97
  %99 = vrot.lane.b32.xlu0 %v50, 122
  %v100 = vpop.permute.xlu0 %99
  %101 = vrot.lane.b32.xlu0 %v51, 122
  %v102 = vpop.permute.xlu0 %101
  %vm103 = vcmask 998400
  %v104 = vsel %vm103, %v96, %v98
  %v105 = vsel %vm103, %v98, %v100
  %v106 = vsel %vm103, %v100, %v102
  %111 = vrot.lane.b32.xlu0 %v36, 121
  %v112 = vpop.permute.xlu0 %111
  %113 = vrot.lane.b32.xlu0 %v37, 121
  %v114 = vpop.permute.xlu0 %113
  %115 = vrot.lane.b32.xlu0 %v38, 121
  %v116 = vpop.permute.xlu0 %115
  %117 = vrot.lane.b32.xlu0 %v39, 121
  %v118 = vpop.permute.xlu0 %117
  %vm119 = vcmask 990208
  %v120 = vsel %vm119, %v112, %v114
  %v121 = vsel %vm119, %v114, %v116
  %v122 = vsel %vm119, %v116, %v118
  %v131 = vrot.slane %v40, 6
  %v132 = vrot.slane %v41, 6
  %v133 = vrot.slane %v42, 6
  %v134 = vrot.slane %v43, 6
  %v139 = vrot.slane %v40, 2
  %v140 = vrot.slane %v41, 2
  %v141 = vrot.slane %v42, 2
  %v142 = vrot.slane %v43, 2
  %143 = vrot.lane.b32.xlu0 %v139, 127
  %v144 = vpop.permute.xlu0 %143
  %145 = vrot.lane.b32.xlu0 %v140, 127
  %v146 = vpop.permute.xlu0 %145
  %147 = vrot.lane.b32.xlu0 %v141, 127
  %v148 = vpop.permute.xlu0 %147
  %149 = vrot.lane.b32.xlu0 %v142, 127
  %v150 = vpop.permute.xlu0 %149
  %v151 = vsel %vm60, %v144, %v146
  %v152 = vsel %vm60, %v146, %v148
  %v153 = vsel %vm60, %v148, %v150
  %v158 = vrot.slane %v40, 4
  %v159 = vrot.slane %v41, 4
  %v160 = vrot.slane %v42, 4
  %v161 = vrot.slane %v43, 4
  %166 = vrot.lane.b32.xlu0 %v40, 127
  %v167 = vpop.permute.xlu0 %166
  %168 = vrot.lane.b32.xlu0 %v41, 127
  %v169 = vpop.permute.xlu0 %168
  %170 = vrot.lane.b32.xlu0 %v42, 127
  %v171 = vpop.permute.xlu0 %170
  %172 = vrot.lane.b32.xlu0 %v43, 127
  %v173 = vpop.permute.xlu0 %172
  %v174 = vsel %vm60, %v167, %v169
  %v175 = vsel %vm60, %v169, %v171
  %v176 = vsel %vm60, %v171, %v173
  %181 = vrot.lane.b32.xlu0 %v139, 122
  %v182 = vpop.permute.xlu0 %181
  %183 = vrot.lane.b32.xlu0 %v140, 122
  %v184 = vpop.permute.xlu0 %183
  %185 = vrot.lane.b32.xlu0 %v141, 122
  %v186 = vpop.permute.xlu0 %185
  %187 = vrot.lane.b32.xlu0 %v142, 122
  %v188 = vpop.permute.xlu0 %187
  %v189 = vsel %vm103, %v182, %v184
  %v190 = vsel %vm103, %v184, %v186
  %v191 = vsel %vm103, %v186, %v188
  %vm196 = vcmask 1043456
  %v197 = vsel %vm196, %v36, %v61
  %v198 = vsel %vm196, %v37, %v62
  %v199 = vsel %vm196, %v38, %v63
  %v200 = vsel %vm196, %v39, %v59
  %vm201 = vcmask 1045504
  %v202 = vsel %vm201, %v197, %v68
  %v203 = vsel %vm201, %v198, %v69
  %v204 = vsel %vm201, %v199, %v70
  %v205 = vsel %vm201, %v200, %v71
  %vm206 = vcmask 1041408
  %v207 = vsel %vm206, %v68, %v88
  %v208 = vsel %vm206, %v69, %v89
  %v209 = vsel %vm206, %v70, %v90
  %v210 = vsel %vm206, %v71, %v87
  %v211 = vsel %vm196, %v207, %v104
  %v212 = vsel %vm196, %v208, %v105
  %v213 = vsel %vm196, %v209, %v106
  %v214 = vsel %vm196, %v210, %v102
  %v215 = vsel %vm201, %v211, %v104
  %v216 = vsel %vm201, %v212, %v105
  %v217 = vsel %vm201, %v213, %v106
  %v218 = vsel %vm201, %v214, %v102
  %v219 = vsel %vm206, %v120, %v131
  %v220 = vsel %vm206, %v121, %v132
  %v221 = vsel %vm206, %v122, %v133
  %v222 = vsel %vm206, %v118, %v134
  %v223 = vsel %vm196, %v219, %v131
  %v224 = vsel %vm196, %v220, %v132
  %v225 = vsel %vm196, %v221, %v133
  %v226 = vsel %vm196, %v222, %v134
  %v227 = vsel %vm201, %v223, %v151
  %v228 = vsel %vm201, %v224, %v152
  %v229 = vsel %vm201, %v225, %v153
  %v230 = vsel %vm201, %v226, %v150
  %v231 = vsel %vm196, %v158, %v174
  %v232 = vsel %vm196, %v159, %v175
  %v233 = vsel %vm196, %v160, %v176
  %v234 = vsel %vm196, %v161, %v173
  %v235 = vsel %vm201, %v231, %v189
  %v236 = vsel %vm201, %v232, %v190
  %v237 = vsel %vm201, %v233, %v191
  %v238 = vsel %vm201, %v234, %v188
  %243 = vrot.lane.b32.xlu0 %v131, 127
  %v244 = vpop.permute.xlu0 %243
  %245 = vrot.lane.b32.xlu0 %v132, 127
  %v246 = vpop.permute.xlu0 %245
  %247 = vrot.lane.b32.xlu0 %v133, 127
  %v248 = vpop.permute.xlu0 %247
  %249 = vrot.lane.b32.xlu0 %v134, 127
  %v250 = vpop.permute.xlu0 %249
  %v251 = vsel %vm60, %v244, %v246
  %v252 = vsel %vm60, %v246, %v248
  %v253 = vsel %vm60, %v248, %v250
  %258 = vrot.lane.b32.xlu0 %v48, 98
  %v259 = vpop.permute.xlu0 %258
  %260 = vrot.lane.b32.xlu0 %v49, 98
  %v261 = vpop.permute.xlu0 %260
  %262 = vrot.lane.b32.xlu0 %v50, 98
  %v263 = vpop.permute.xlu0 %262
  %264 = vrot.lane.b32.xlu0 %v51, 98
  %v265 = vpop.permute.xlu0 %264
  %vm266 = vcmask 801792
  %v267 = vsel %vm266, %v259, %v261
  %v268 = vsel %vm266, %v261, %v263
  %v269 = vsel %vm266, %v263, %v265
  %274 = vrot.lane.b32.xlu0 %v36, 97
  %v275 = vpop.permute.xlu0 %274
  %276 = vrot.lane.b32.xlu0 %v37, 97
  %v277 = vpop.permute.xlu0 %276
  %278 = vrot.lane.b32.xlu0 %v38, 97
  %v279 = vpop.permute.xlu0 %278
  %280 = vrot.lane.b32.xlu0 %v39, 97
  %v281 = vpop.permute.xlu0 %280
  %vm282 = vcmask 793600
  %v283 = vsel %vm282, %v275, %v277
  %v284 = vsel %vm282, %v277, %v279
  %v285 = vsel %vm282, %v279, %v281
  %290 = vrot.lane.b32.xlu0 %v76, 98
  %v291 = vpop.permute.xlu0 %290
  %292 = vrot.lane.b32.xlu0 %v77, 98
  %v293 = vpop.permute.xlu0 %292
  %294 = vrot.lane.b32.xlu0 %v78, 98
  %v295 = vpop.permute.xlu0 %294
  %296 = vrot.lane.b32.xlu0 %v79, 98
  %v297 = vpop.permute.xlu0 %296
  %v298 = vsel %vm266, %v291, %v293
  %v299 = vsel %vm266, %v293, %v295
  %v300 = vsel %vm266, %v295, %v297
  %305 = vrot.lane.b32.xlu0 %v68, 97
  %v306 = vpop.permute.xlu0 %305
  %307 = vrot.lane.b32.xlu0 %v69, 97
  %v308 = vpop.permute.xlu0 %307
  %309 = vrot.lane.b32.xlu0 %v70, 97
  %v310 = vpop.permute.xlu0 %309
  %311 = vrot.lane.b32.xlu0 %v71, 97
  %v312 = vpop.permute.xlu0 %311
  %v313 = vsel %vm282, %v306, %v308
  %v314 = vsel %vm282, %v308, %v310
  %v315 = vsel %vm282, %v310, %v312
  %320 = vrot.lane.b32.xlu0 %v36, 92
  %v321 = vpop.permute.xlu0 %320
  %322 = vrot.lane.b32.xlu0 %v37, 92
  %v323 = vpop.permute.xlu0 %322
  %324 = vrot.lane.b32.xlu0 %v38, 92
  %v325 = vpop.permute.xlu0 %324
  %326 = vrot.lane.b32.xlu0 %v39, 92
  %v327 = vpop.permute.xlu0 %326
  %vm328 = vcmask 752640
  %v329 = vsel %vm328, %v321, %v323
  %v330 = vsel %vm328, %v323, %v325
  %v331 = vsel %vm328, %v325, %v327
  %336 = vrot.lane.b32.xlu0 %v48, 91
  %v337 = vpop.permute.xlu0 %336
  %338 = vrot.lane.b32.xlu0 %v49, 91
  %v339 = vpop.permute.xlu0 %338
  %340 = vrot.lane.b32.xlu0 %v50, 91
  %v341 = vpop.permute.xlu0 %340
  %342 = vrot.lane.b32.xlu0 %v51, 91
  %v343 = vpop.permute.xlu0 %342
  %vm344 = vcmask 744448
  %v345 = vsel %vm344, %v337, %v339
  %v346 = vsel %vm344, %v339, %v341
  %v347 = vsel %vm344, %v341, %v343
  %v352 = vsel %vm206, %v139, %v251
  %v353 = vsel %vm206, %v140, %v252
  %v354 = vsel %vm206, %v141, %v253
  %v355 = vsel %vm206, %v142, %v250
  %v356 = vsel %vm196, %v352, %v267
  %v357 = vsel %vm196, %v353, %v268
  %v358 = vsel %vm196, %v354, %v269
  %v359 = vsel %vm196, %v355, %v265
  %v360 = vsel %vm201, %v356, %v267
  %v361 = vsel %vm201, %v357, %v268
  %v362 = vsel %vm201, %v358, %v269
  %v363 = vsel %vm201, %v359, %v265
  %v364 = vsel %vm206, %v283, %v298
  %v365 = vsel %vm206, %v284, %v299
  %v366 = vsel %vm206, %v285, %v300
  %v367 = vsel %vm206, %v281, %v297
  %v368 = vsel %vm196, %v364, %v298
  %v369 = vsel %vm196, %v365, %v299
  %v370 = vsel %vm196, %v366, %v300
  %v371 = vsel %vm196, %v367, %v297
  %v372 = vsel %vm201, %v368, %v313
  %v373 = vsel %vm201, %v369, %v314
  %v374 = vsel %vm201, %v370, %v315
  %v375 = vsel %vm201, %v371, %v312
  %v376 = vsel %vm196, %v329, %v345
  %v377 = vsel %vm196, %v330, %v346
  %v378 = vsel %vm196, %v331, %v347
  %v379 = vsel %vm196, %v327, %v343
  %392 = vrot.lane.b32.xlu0 %v360, 122
  %v393 = vpop.permute.xlu0 %392
  %394 = vrot.lane.b32.xlu0 %v361, 122
  %v395 = vpop.permute.xlu0 %394
  %396 = vrot.lane.b32.xlu0 %v362, 122
  %v397 = vpop.permute.xlu0 %396
  %398 = vrot.lane.b32.xlu0 %v363, 122
  %v399 = vpop.permute.xlu0 %398
  %400 = vrot.lane.b32.xlu0 %v372, 122
  %v401 = vpop.permute.xlu0 %400
  %402 = vrot.lane.b32.xlu0 %v373, 122
  %v403 = vpop.permute.xlu0 %402
  %404 = vrot.lane.b32.xlu0 %v374, 122
  %v405 = vpop.permute.xlu0 %404
  %406 = vrot.lane.b32.xlu0 %v375, 122
  %v407 = vpop.permute.xlu0 %406
  %408 = vrot.lane.b32.xlu0 %v376, 122
  %v409 = vpop.permute.xlu0 %408
  %410 = vrot.lane.b32.xlu0 %v377, 122
  %v411 = vpop.permute.xlu0 %410
  %412 = vrot.lane.b32.xlu0 %v378, 122
  %v413 = vpop.permute.xlu0 %412
  %414 = vrot.lane.b32.xlu0 %v379, 122
  %v415 = vpop.permute.xlu0 %414
  %v416 = vsel %vm103, %v393, %v395
  %v417 = vsel %vm103, %v395, %v397
  %v418 = vsel %vm103, %v397, %v399
  %v419 = vsel %vm103, %v401, %v403
  %v420 = vsel %vm103, %v403, %v405
  %v421 = vsel %vm103, %v405, %v407
  %v422 = vsel %vm103, %v409, %v411
  %v423 = vsel %vm103, %v411, %v413
  %v424 = vsel %vm103, %v413, %v415
  %v437 = vld [vmem:[%s1] sm:$0x3]
  %v438 = vpack.c.bf16 %v215, %v202
  %v439 = vpack.c.bf16 %v216, %v203
  %v440 = vpack.c.bf16 %v217, %v204
  %v441 = vpack.c.bf16 %v218, %v205
  %v442 = vpack.c.bf16 %v235, %v227
  %v443 = vpack.c.bf16 %v236, %v228
  %v444 = vpack.c.bf16 %v237, %v229
  %v445 = vpack.c.bf16 %v238, %v230
  %v446 = vpack.c.bf16 %v419, %v416
  %v447 = vpack.c.bf16 %v420, %v417
  %v448 = vpack.c.bf16 %v421, %v418
  %v449 = vpack.c.bf16 %v407, %v399
  %v450 = vpack.c.bf16 %v422, %v422
  %v451 = vpack.c.bf16 %v423, %v423
  %v452 = vpack.c.bf16 %v424, %v424
  %v453 = vpack.c.bf16 %v415, %v415
  %v454 = vld [vmem:[%s2] sm:$0xf]
  %456 = vset.pattern.permute.xlu0 0
  %457 = vperm.xlu0 %456, %v454
  %v458 = vpop.permute.xlu0 %457
  %vm460 = vcmask 441344
  %v462 = vsel %vm460, %v437, 0
  %vm464 = vcmask 1042432
  %v466 = vsel %vm464, %v450, 0
  %v469 = vsel %vm464, %v451, 0
  %v472 = vsel %vm464, %v452, 0
  %v475 = vsel %vm464, %v453, 0
  %477 = vmatprep.subr.bf16.mxu0 0
  %478 = vmatpush1.bf16.msra.mxu0 0
  %479 = vmatprep.subr.bf16.mxu0 0
  %480 = vmatpush1.bf16.msra.mxu0 0
  %481 = vmatprep.subr.bf16.mxu0 0
  %482 = vmatpush1.bf16.msra.mxu0 0
  %483 = vmatprep.subr.bf16.mxu0 0
  %484 = vmatpush1.bf16.msra.mxu0 0
  %485 = vmatprep.subr.bf16.mxu0 %v469
  %486 = vmatpush1.bf16.msra.mxu0 %v466
  %487 = vmatprep.subr.bf16.mxu0 %v447
  %488 = vmatpush1.bf16.msra.mxu0 %v446
  %489 = vmatprep.subr.bf16.mxu0 %v443
  %490 = vmatpush1.bf16.msra.mxu0 %v442
  %491 = vmatprep.subr.bf16.mxu0 %v439
  %492 = vmatpush1.bf16.msra.mxu0 %v438
  %493 = vmatprep.subr.bf16.mxu0 0
  %494 = vmatpush2.bf16.msra.mxu0 0
  %495 = vmatprep.subr.bf16.mxu0 0
  %496 = vmatpush2.bf16.msra.mxu0 0
  %497 = vmatprep.subr.bf16.mxu0 0
  %498 = vmatpush2.bf16.msra.mxu0 0
  %499 = vmatprep.subr.bf16.mxu0 0
  %500 = vmatpush2.bf16.msra.mxu0 0
  %501 = vmatprep.subr.bf16.mxu0 0
  %502 = vmatpush2.bf16.msra.mxu0 0
  %503 = vmatprep.subr.bf16.mxu0 0
  %504 = vmatpush2.bf16.msra.mxu0 0
  %505 = vmatprep.subr.bf16.mxu0 0
  %506 = vmatpush2.bf16.msra.mxu0 0
  %507 = vmatprep.subr.bf16.mxu0 0
  %508 = vmatpush2.bf16.msra.mxu0 0
  %509 = vmatprep.mubr.bf16.mxu0 0
  %510 = vmatmul.mubr.bf16.gmra.mxu0 %v462
  %v511 = vpop.f32.mrf.mxu0
  %v512 = vadd.f32 %v458, %v511
  %v513 = vpop.f32.mrf.mxu0
  %v514 = vadd.f32 %v458, %v513
  %v515 = vpop.f32.mrf.mxu0
  %v516 = vpop.f32.mrf.mxu0
  %517 = vdwg.mxu0
  %518 = vmatprep.subr.bf16.mxu0 0
  %519 = vmatpush1.bf16.msra.mxu0 0
  %520 = vmatprep.subr.bf16.mxu0 0
  %521 = vmatpush1.bf16.msra.mxu0 0
  %522 = vmatprep.subr.bf16.mxu0 0
  %523 = vmatpush1.bf16.msra.mxu0 0
  %524 = vmatprep.subr.bf16.mxu0 0
  %525 = vmatpush1.bf16.msra.mxu0 0
  %526 = vmatprep.subr.bf16.mxu0 %v475
  %527 = vmatpush1.bf16.msra.mxu0 %v472
  %528 = vmatprep.subr.bf16.mxu0 %v449
  %529 = vmatpush1.bf16.msra.mxu0 %v448
  %530 = vmatprep.subr.bf16.mxu0 %v445
  %531 = vmatpush1.bf16.msra.mxu0 %v444
  %532 = vmatprep.subr.bf16.mxu0 %v441
  %533 = vmatpush1.bf16.msra.mxu0 %v440
  %534 = vmatprep.subr.bf16.mxu0 0
  %535 = vmatpush2.bf16.msra.mxu0 0
  %536 = vmatprep.subr.bf16.mxu0 0
  %537 = vmatpush2.bf16.msra.mxu0 0
  %538 = vmatprep.subr.bf16.mxu0 0
  %539 = vmatpush2.bf16.msra.mxu0 0
  %540 = vmatprep.subr.bf16.mxu0 0
  %541 = vmatpush2.bf16.msra.mxu0 0
  %542 = vmatprep.subr.bf16.mxu0 0
  %543 = vmatpush2.bf16.msra.mxu0 0
  %544 = vmatprep.subr.bf16.mxu0 0
  %545 = vmatpush2.bf16.msra.mxu0 0
  %546 = vmatprep.subr.bf16.mxu0 0
  %547 = vmatpush2.bf16.msra.mxu0 0
  %548 = vmatprep.subr.bf16.mxu0 0
  %549 = vmatpush2.bf16.msra.mxu0 0
  %550 = vmatprep.mubr.bf16.mxu0 0
  %551 = vmatmul.mubr.bf16.gmra.mxu0 %v462
  %v552 = vpop.f32.mrf.mxu0
  %v553 = vadd.f32 %v458, %v552
  %v554 = vpop.f32.mrf.mxu0
  %v555 = vadd.f32 %v458, %v554
  %v556 = vpop.f32.mrf.mxu0
  %v557 = vpop.f32.mrf.mxu0
  %558 = vdwg.mxu0
  %vm559 = vcmp.gt.f32.partialorder %v512, 0.0
  %vm560 = vcmp.gt.f32.partialorder %v514, 0.0
  %vm561 = vcmp.gt.f32.partialorder %v553, 0.0
  %vm562 = vcmp.gt.f32.partialorder %v555, 0.0
  %v563 = vmul.f32 %v512, 0.01
  %v564 = vmul.f32 %v514, 0.01
  %v565 = vmul.f32 %v553, 0.01
  %v566 = vmul.f32 %v555, 0.01
  %v567 = vsel %vm559, %v512, %v563
  %v568 = vsel %vm560, %v514, %v564
  %v569 = vsel %vm561, %v553, %v565
  %v570 = vsel %vm562, %v555, %v566
  %v574 = vrot.slane %v567, 4
  %v575 = vrot.slane %v568, 4
  %v576 = vrot.slane %v569, 4
  %577 = vrot.lane.b32.xlu0 %v574, 127
  %v578 = vpop.permute.xlu0 %577
  %579 = vrot.lane.b32.xlu0 %v575, 127
  %v580 = vpop.permute.xlu0 %579
  %581 = vrot.lane.b32.xlu0 %v576, 127
  %v582 = vpop.permute.xlu0 %581
  %v583 = vsel %vm60, %v578, %v580
  %v584 = vsel %vm60, %v580, %v582
  %588 = vrot.lane.b32.xlu0 %v567, 126
  %v589 = vpop.permute.xlu0 %588
  %590 = vrot.lane.b32.xlu0 %v568, 126
  %v591 = vpop.permute.xlu0 %590
  %592 = vrot.lane.b32.xlu0 %v569, 126
  %v593 = vpop.permute.xlu0 %592
  %vm594 = vcmask 1031168
  %v595 = vsel %vm594, %v589, %v591
  %v596 = vsel %vm594, %v591, %v593
  %600 = vrot.lane.b32.xlu0 %v574, 122
  %v601 = vpop.permute.xlu0 %600
  %602 = vrot.lane.b32.xlu0 %v575, 122
  %v603 = vpop.permute.xlu0 %602
  %604 = vrot.lane.b32.xlu0 %v576, 122
  %v605 = vpop.permute.xlu0 %604
  %v606 = vsel %vm103, %v601, %v603
  %v607 = vsel %vm103, %v603, %v605
  %611 = vrot.lane.b32.xlu0 %v567, 121
  %v612 = vpop.permute.xlu0 %611
  %613 = vrot.lane.b32.xlu0 %v568, 121
  %v614 = vpop.permute.xlu0 %613
  %615 = vrot.lane.b32.xlu0 %v569, 121
  %v616 = vpop.permute.xlu0 %615
  %v617 = vsel %vm119, %v612, %v614
  %v618 = vsel %vm119, %v614, %v616
  %622 = vrot.lane.b32.xlu0 %v574, 120
  %v623 = vpop.permute.xlu0 %622
  %624 = vrot.lane.b32.xlu0 %v575, 120
  %v625 = vpop.permute.xlu0 %624
  %626 = vrot.lane.b32.xlu0 %v576, 120
  %v627 = vpop.permute.xlu0 %626
  %vm628 = vcmask 982016
  %v629 = vsel %vm628, %v623, %v625
  %v630 = vsel %vm628, %v625, %v627
  %634 = vrot.lane.b32.xlu0 %v567, 116
  %v635 = vpop.permute.xlu0 %634
  %636 = vrot.lane.b32.xlu0 %v568, 116
  %v637 = vpop.permute.xlu0 %636
  %638 = vrot.lane.b32.xlu0 %v569, 116
  %v639 = vpop.permute.xlu0 %638
  %vm640 = vcmask 949248
  %v641 = vsel %vm640, %v635, %v637
  %v642 = vsel %vm640, %v637, %v639
  %646 = vrot.lane.b32.xlu0 %v574, 115
  %v647 = vpop.permute.xlu0 %646
  %648 = vrot.lane.b32.xlu0 %v575, 115
  %v649 = vpop.permute.xlu0 %648
  %650 = vrot.lane.b32.xlu0 %v576, 115
  %v651 = vpop.permute.xlu0 %650
  %vm652 = vcmask 941056
  %v653 = vsel %vm652, %v647, %v649
  %v654 = vsel %vm652, %v649, %v651
  %658 = vrot.lane.b32.xlu0 %v567, 114
  %v659 = vpop.permute.xlu0 %658
  %660 = vrot.lane.b32.xlu0 %v568, 114
  %v661 = vpop.permute.xlu0 %660
  %662 = vrot.lane.b32.xlu0 %v569, 114
  %v663 = vpop.permute.xlu0 %662
  %vm664 = vcmask 932864
  %v665 = vsel %vm664, %v659, %v661
  %v666 = vsel %vm664, %v661, %v663
  %670 = vrot.lane.b32.xlu0 %v574, 92
  %v671 = vpop.permute.xlu0 %670
  %672 = vrot.lane.b32.xlu0 %v575, 92
  %v673 = vpop.permute.xlu0 %672
  %674 = vrot.lane.b32.xlu0 %v576, 92
  %v675 = vpop.permute.xlu0 %674
  %v676 = vsel %vm328, %v671, %v673
  %v677 = vsel %vm328, %v673, %v675
  %681 = vrot.lane.b32.xlu0 %v567, 91
  %v682 = vpop.permute.xlu0 %681
  %683 = vrot.lane.b32.xlu0 %v568, 91
  %v684 = vpop.permute.xlu0 %683
  %685 = vrot.lane.b32.xlu0 %v569, 91
  %v686 = vpop.permute.xlu0 %685
  %v687 = vsel %vm344, %v682, %v684
  %v688 = vsel %vm344, %v684, %v686
  %692 = vrot.lane.b32.xlu0 %v574, 90
  %v693 = vpop.permute.xlu0 %692
  %694 = vrot.lane.b32.xlu0 %v575, 90
  %v695 = vpop.permute.xlu0 %694
  %696 = vrot.lane.b32.xlu0 %v576, 90
  %v697 = vpop.permute.xlu0 %696
  %vm698 = vcmask 736256
  %v699 = vsel %vm698, %v693, %v695
  %v700 = vsel %vm698, %v695, %v697
  %704 = vrot.lane.b32.xlu0 %v567, 86
  %v705 = vpop.permute.xlu0 %704
  %706 = vrot.lane.b32.xlu0 %v568, 86
  %v707 = vpop.permute.xlu0 %706
  %708 = vrot.lane.b32.xlu0 %v569, 86
  %v709 = vpop.permute.xlu0 %708
  %vm710 = vcmask 703488
  %v711 = vsel %vm710, %v705, %v707
  %v712 = vsel %vm710, %v707, %v709
  %716 = vrot.lane.b32.xlu0 %v574, 85
  %v717 = vpop.permute.xlu0 %716
  %718 = vrot.lane.b32.xlu0 %v575, 85
  %v719 = vpop.permute.xlu0 %718
  %720 = vrot.lane.b32.xlu0 %v576, 85
  %v721 = vpop.permute.xlu0 %720
  %vm722 = vcmask 695296
  %v723 = vsel %vm722, %v717, %v719
  %v724 = vsel %vm722, %v719, %v721
  %728 = vrot.lane.b32.xlu0 %v567, 84
  %v729 = vpop.permute.xlu0 %728
  %730 = vrot.lane.b32.xlu0 %v568, 84
  %v731 = vpop.permute.xlu0 %730
  %732 = vrot.lane.b32.xlu0 %v569, 84
  %v733 = vpop.permute.xlu0 %732
  %vm734 = vcmask 687104
  %v735 = vsel %vm734, %v729, %v731
  %v736 = vsel %vm734, %v731, %v733
  %740 = vrot.lane.b32.xlu0 %v574, 80
  %v741 = vpop.permute.xlu0 %740
  %742 = vrot.lane.b32.xlu0 %v575, 80
  %v743 = vpop.permute.xlu0 %742
  %744 = vrot.lane.b32.xlu0 %v576, 80
  %v745 = vpop.permute.xlu0 %744
  %vm746 = vcmask 654336
  %v747 = vsel %vm746, %v741, %v743
  %v748 = vsel %vm746, %v743, %v745
  %v752 = vsel %vm196, %v567, %v583
  %v753 = vsel %vm196, %v568, %v584
  %v754 = vsel %vm196, %v569, %v582
  %v755 = vsel %vm196, %v595, %v606
  %v756 = vsel %vm196, %v596, %v607
  %v757 = vsel %vm196, %v593, %v605
  %v758 = vsel %vm196, %v617, %v629
  %v759 = vsel %vm196, %v618, %v630
  %v760 = vsel %vm196, %v616, %v627
  %v761 = vsel %vm196, %v641, %v653
  %v762 = vsel %vm196, %v642, %v654
  %v763 = vsel %vm196, %v639, %v651
  %v764 = vsel %vm196, %v665, %v676
  %v765 = vsel %vm196, %v666, %v677
  %v766 = vsel %vm196, %v663, %v675
  %v767 = vsel %vm196, %v687, %v699
  %v768 = vsel %vm196, %v688, %v700
  %v769 = vsel %vm196, %v686, %v697
  %v770 = vsel %vm196, %v711, %v723
  %v771 = vsel %vm196, %v712, %v724
  %v772 = vsel %vm196, %v709, %v721
  %v773 = vsel %vm196, %v735, %v747
  %v774 = vsel %vm196, %v736, %v748
  %v775 = vsel %vm196, %v733, %v745
  %776 = vrot.lane.b32.xlu0 %v567, 105
  %v777 = vpop.permute.xlu0 %776
  %778 = vrot.lane.b32.xlu0 %v568, 105
  %v779 = vpop.permute.xlu0 %778
  %780 = vrot.lane.b32.xlu0 %v569, 105
  %v781 = vpop.permute.xlu0 %780
  %vm782 = vcmask 859136
  %v783 = vsel %vm782, %v777, %v779
  %v784 = vsel %vm782, %v779, %v781
  %788 = vrot.lane.b32.xlu0 %v574, 104
  %v789 = vpop.permute.xlu0 %788
  %790 = vrot.lane.b32.xlu0 %v575, 104
  %v791 = vpop.permute.xlu0 %790
  %792 = vrot.lane.b32.xlu0 %v576, 104
  %v793 = vpop.permute.xlu0 %792
  %vm794 = vcmask 850944
  %v795 = vsel %vm794, %v789, %v791
  %v796 = vsel %vm794, %v791, %v793
  %800 = vrot.lane.b32.xlu0 %v567, 103
  %v801 = vpop.permute.xlu0 %800
  %802 = vrot.lane.b32.xlu0 %v568, 103
  %v803 = vpop.permute.xlu0 %802
  %804 = vrot.lane.b32.xlu0 %v569, 103
  %v805 = vpop.permute.xlu0 %804
  %vm806 = vcmask 842752
  %v807 = vsel %vm806, %v801, %v803
  %v808 = vsel %vm806, %v803, %v805
  %812 = vrot.lane.b32.xlu0 %v574, 99
  %v813 = vpop.permute.xlu0 %812
  %814 = vrot.lane.b32.xlu0 %v575, 99
  %v815 = vpop.permute.xlu0 %814
  %816 = vrot.lane.b32.xlu0 %v576, 99
  %v817 = vpop.permute.xlu0 %816
  %vm818 = vcmask 809984
  %v819 = vsel %vm818, %v813, %v815
  %v820 = vsel %vm818, %v815, %v817
  %824 = vrot.lane.b32.xlu0 %v567, 98
  %v825 = vpop.permute.xlu0 %824
  %826 = vrot.lane.b32.xlu0 %v568, 98
  %v827 = vpop.permute.xlu0 %826
  %828 = vrot.lane.b32.xlu0 %v569, 98
  %v829 = vpop.permute.xlu0 %828
  %v830 = vsel %vm266, %v825, %v827
  %v831 = vsel %vm266, %v827, %v829
  %835 = vrot.lane.b32.xlu0 %v574, 97
  %v836 = vpop.permute.xlu0 %835
  %837 = vrot.lane.b32.xlu0 %v575, 97
  %v838 = vpop.permute.xlu0 %837
  %839 = vrot.lane.b32.xlu0 %v576, 97
  %v840 = vpop.permute.xlu0 %839
  %v841 = vsel %vm282, %v836, %v838
  %v842 = vsel %vm282, %v838, %v840
  %847 = vrot.lane.b32.xlu0 %v567, 93
  %v848 = vpop.permute.xlu0 %847
  %849 = vrot.lane.b32.xlu0 %v568, 93
  %v850 = vpop.permute.xlu0 %849
  %851 = vrot.lane.b32.xlu0 %v569, 93
  %v852 = vpop.permute.xlu0 %851
  %853 = vrot.lane.b32.xlu0 %v570, 93
  %v854 = vpop.permute.xlu0 %853
  %vm855 = vcmask 760832
  %v856 = vsel %vm855, %v848, %v850
  %v857 = vsel %vm855, %v850, %v852
  %v858 = vsel %vm855, %v852, %v854
  %v862 = vrot.slane %v570, 4
  %863 = vrot.lane.b32.xlu0 %v862, 92
  %v864 = vpop.permute.xlu0 %863
  %v865 = vsel %vm328, %v675, %v864
  %867 = vrot.lane.b32.xlu0 %v570, 91
  %v868 = vpop.permute.xlu0 %867
  %v869 = vsel %vm344, %v686, %v868
  %v870 = vsel %vm196, %v783, %v795
  %v871 = vsel %vm196, %v784, %v796
  %v872 = vsel %vm196, %v781, %v793
  %v873 = vsel %vm196, %v807, %v819
  %v874 = vsel %vm196, %v808, %v820
  %v875 = vsel %vm196, %v805, %v817
  %v876 = vsel %vm196, %v830, %v841
  %v877 = vsel %vm196, %v831, %v842
  %v878 = vsel %vm196, %v829, %v840
  %v879 = vsel %vm196, %v856, %v676
  %v880 = vsel %vm196, %v857, %v677
  %v881 = vsel %vm196, %v858, %v865
  %897 = vrot.lane.b32.xlu0 %v752, 79
  %v898 = vpop.permute.xlu0 %897
  %899 = vrot.lane.b32.xlu0 %v753, 79
  %v900 = vpop.permute.xlu0 %899
  %901 = vrot.lane.b32.xlu0 %v754, 79
  %v902 = vpop.permute.xlu0 %901
  %903 = vrot.lane.b32.xlu0 %v870, 79
  %v904 = vpop.permute.xlu0 %903
  %905 = vrot.lane.b32.xlu0 %v871, 79
  %v906 = vpop.permute.xlu0 %905
  %907 = vrot.lane.b32.xlu0 %v872, 79
  %v908 = vpop.permute.xlu0 %907
  %909 = vrot.lane.b32.xlu0 %v873, 79
  %v910 = vpop.permute.xlu0 %909
  %911 = vrot.lane.b32.xlu0 %v874, 79
  %v912 = vpop.permute.xlu0 %911
  %913 = vrot.lane.b32.xlu0 %v875, 79
  %v914 = vpop.permute.xlu0 %913
  %915 = vrot.lane.b32.xlu0 %v876, 79
  %v916 = vpop.permute.xlu0 %915
  %917 = vrot.lane.b32.xlu0 %v877, 79
  %v918 = vpop.permute.xlu0 %917
  %919 = vrot.lane.b32.xlu0 %v878, 79
  %v920 = vpop.permute.xlu0 %919
  %921 = vrot.lane.b32.xlu0 %v879, 79
  %v922 = vpop.permute.xlu0 %921
  %923 = vrot.lane.b32.xlu0 %v880, 79
  %v924 = vpop.permute.xlu0 %923
  %925 = vrot.lane.b32.xlu0 %v881, 79
  %v926 = vpop.permute.xlu0 %925
  %927 = vrot.lane.b32.xlu0 %v687, 79
  %v928 = vpop.permute.xlu0 %927
  %929 = vrot.lane.b32.xlu0 %v688, 79
  %v930 = vpop.permute.xlu0 %929
  %931 = vrot.lane.b32.xlu0 %v869, 79
  %v932 = vpop.permute.xlu0 %931
  %vm933 = vcmask 646144
  %v934 = vsel %vm933, %v898, %v900
  %v935 = vsel %vm933, %v900, %v902
  %v936 = vsel %vm933, %v904, %v906
  %v937 = vsel %vm933, %v906, %v908
  %v938 = vsel %vm933, %v910, %v912
  %v939 = vsel %vm933, %v912, %v914
  %v940 = vsel %vm933, %v916, %v918
  %v941 = vsel %vm933, %v918, %v920
  %v942 = vsel %vm933, %v922, %v924
  %v943 = vsel %vm933, %v924, %v926
  %v944 = vsel %vm933, %v928, %v930
  %v945 = vsel %vm933, %v930, %v932
  %v964 = vld [vmem:[%s3] sm:$0xf]
  %v965 = vpack.c.bf16 %v755, %v752
  %v966 = vpack.c.bf16 %v756, %v753
  %v967 = vpack.c.bf16 %v757, %v754
  %v968 = vpack.c.bf16 %v761, %v758
  %v969 = vpack.c.bf16 %v762, %v759
  %v970 = vpack.c.bf16 %v763, %v760
  %v971 = vpack.c.bf16 %v767, %v764
  %v972 = vpack.c.bf16 %v768, %v765
  %v973 = vpack.c.bf16 %v769, %v766
  %v974 = vpack.c.bf16 %v773, %v770
  %v975 = vpack.c.bf16 %v774, %v771
  %v976 = vpack.c.bf16 %v775, %v772
  %v977 = vpack.c.bf16 %v936, %v934
  %v978 = vpack.c.bf16 %v937, %v935
  %v979 = vpack.c.bf16 %v908, %v902
  %v980 = vpack.c.bf16 %v940, %v938
  %v981 = vpack.c.bf16 %v941, %v939
  %v982 = vpack.c.bf16 %v920, %v914
  %v983 = vpack.c.bf16 %v944, %v942
  %v984 = vpack.c.bf16 %v945, %v943
  %v985 = vpack.c.bf16 %v932, %v926
  %vm986 = vcmask 883712
  %v988 = vsel %vm986, %v964, 0
  %v991 = vsel %vm201, %v983, 0
  %v994 = vsel %vm201, %v984, 0
  %v997 = vsel %vm201, %v985, 0
  %999 = vmatprep.subr.bf16.mxu0 0
  %1000 = vmatpush1.bf16.msra.mxu0 0
  %1001 = vmatprep.subr.bf16.mxu0 %v994
  %1002 = vmatpush1.bf16.msra.mxu0 %v991
  %1003 = vmatprep.subr.bf16.mxu0 %v981
  %1004 = vmatpush1.bf16.msra.mxu0 %v980
  %1005 = vmatprep.subr.bf16.mxu0 %v978
  %1006 = vmatpush1.bf16.msra.mxu0 %v977
  %1007 = vmatprep.subr.bf16.mxu0 %v975
  %1008 = vmatpush1.bf16.msra.mxu0 %v974
  %1009 = vmatprep.subr.bf16.mxu0 %v972
  %1010 = vmatpush1.bf16.msra.mxu0 %v971
  %1011 = vmatprep.subr.bf16.mxu0 %v969
  %1012 = vmatpush1.bf16.msra.mxu0 %v968
  %1013 = vmatprep.subr.bf16.mxu0 %v966
  %1014 = vmatpush1.bf16.msra.mxu0 %v965
  %1015 = vmatprep.subr.bf16.mxu0 0
  %1016 = vmatpush2.bf16.msra.mxu0 0
  %1017 = vmatprep.subr.bf16.mxu0 0
  %1018 = vmatpush2.bf16.msra.mxu0 0
  %1019 = vmatprep.subr.bf16.mxu0 0
  %1020 = vmatpush2.bf16.msra.mxu0 0
  %1021 = vmatprep.subr.bf16.mxu0 0
  %1022 = vmatpush2.bf16.msra.mxu0 0
  %1023 = vmatprep.subr.bf16.mxu0 0
  %1024 = vmatpush2.bf16.msra.mxu0 0
  %1025 = vmatprep.subr.bf16.mxu0 0
  %1026 = vmatpush2.bf16.msra.mxu0 0
  %1027 = vmatprep.subr.bf16.mxu0 0
  %1028 = vmatpush2.bf16.msra.mxu0 0
  %1029 = vmatprep.subr.bf16.mxu0 0
  %1030 = vmatpush2.bf16.msra.mxu0 0
  %1031 = vmatprep.mubr.bf16.mxu0 0
  %1032 = vmatmul.mubr.bf16.gmra.mxu0 %v988
  %v1033 = vpop.f32.mrf.mxu0
  %v1034 = vadd.f32 0.0, %v1033
  %v1035 = vpop.f32.mrf.mxu0
  %v1036 = vadd.f32 0.0, %v1035
  %v1037 = vpop.f32.mrf.mxu0
  %v1038 = vpop.f32.mrf.mxu0
  %1039 = vdwg.mxu0
  %1040 = vmatprep.subr.bf16.mxu0 0
  %1041 = vmatpush1.bf16.msra.mxu0 0
  %1042 = vmatprep.subr.bf16.mxu0 0
  %1043 = vmatpush1.bf16.msra.mxu0 %v997
  %1044 = vmatprep.subr.bf16.mxu0 0
  %1045 = vmatpush1.bf16.msra.mxu0 %v982
  %1046 = vmatprep.subr.bf16.mxu0 0
  %1047 = vmatpush1.bf16.msra.mxu0 %v979
  %1048 = vmatprep.subr.bf16.mxu0 0
  %1049 = vmatpush1.bf16.msra.mxu0 %v976
  %1050 = vmatprep.subr.bf16.mxu0 0
  %1051 = vmatpush1.bf16.msra.mxu0 %v973
  %1052 = vmatprep.subr.bf16.mxu0 0
  %1053 = vmatpush1.bf16.msra.mxu0 %v970
  %1054 = vmatprep.subr.bf16.mxu0 0
  %1055 = vmatpush1.bf16.msra.mxu0 %v967
  %1056 = vmatprep.subr.bf16.mxu0 0
  %1057 = vmatpush2.bf16.msra.mxu0 0
  %1058 = vmatprep.subr.bf16.mxu0 0
  %1059 = vmatpush2.bf16.msra.mxu0 0
  %1060 = vmatprep.subr.bf16.mxu0 0
  %1061 = vmatpush2.bf16.msra.mxu0 0
  %1062 = vmatprep.subr.bf16.mxu0 0
  %1063 = vmatpush2.bf16.msra.mxu0 0
  %1064 = vmatprep.subr.bf16.mxu0 0
  %1065 = vmatpush2.bf16.msra.mxu0 0
  %1066 = vmatprep.subr.bf16.mxu0 0
  %1067 = vmatpush2.bf16.msra.mxu0 0
  %1068 = vmatprep.subr.bf16.mxu0 0
  %1069 = vmatpush2.bf16.msra.mxu0 0
  %1070 = vmatprep.subr.bf16.mxu0 0
  %1071 = vmatpush2.bf16.msra.mxu0 0
  %1072 = vmatprep.mubr.bf16.mxu0 0
  %1073 = vmatmul.mubr.bf16.gmra.mxu0 %v988
  %v1074 = vpop.f32.mrf.mxu0
  %v1075 = vadd.f32 0.0, %v1074
  %v1076 = vpop.f32.mrf.mxu0
  %v1077 = vpop.f32.mrf.mxu0
  %v1078 = vpop.f32.mrf.mxu0
  %1079 = vdwg.mxu0
  %v1080 = vpack.c.bf16 %v1034, %v1034
  %v1081 = vpack.c.bf16 %v1036, %v1036
  %v1082 = vpack.c.bf16 %v1075, %v1075
  %v1083 = vld [vmem:[%s4] sm:$0xf]
  %v1084 = vld [vmem:[%s4 + $0x4] sm:$0xf]
  %v1085 = vld [vmem:[%s4 + $0x8] sm:$0xf]
  %v1086 = vld [vmem:[%s4 + $0xc] sm:$0xf]
  %v1087 = vld [vmem:[%s4 + $0x10] sm:$0xf]
  %v1088 = vld [vmem:[%s4 + $0x14] sm:$0xf]
  %v1089 = vld [vmem:[%s4 + $0x18] sm:$0xf]
  %v1090 = vld [vmem:[%s4 + $0x1c] sm:$0xf]
  %v1091 = vld [vmem:[%s4 + $0x20] sm:$0xf]
  %v1092 = vld [vmem:[%s4 + $0x24] sm:$0xf]
  %v1093 = vld [vmem:[%s4 + $0x28] sm:$0xf]
  %v1094 = vld [vmem:[%s4 + $0x2c] sm:$0xf]
  %v1095 = vld [vmem:[%s4 + $0x30] sm:$0xf]
  %v1096 = vld [vmem:[%s4 + $0x34] sm:$0xf]
  %v1097 = vld [vmem:[%s4 + $0x38] sm:$0xf]
  %v1098 = vld [vmem:[%s4 + $0x3c] sm:$0xf]
  %v1099 = vld [vmem:[%s4 + $0x40] sm:$0xf]
  %v1100 = vld [vmem:[%s4 + $0x44] sm:$0xf]
  %v1101 = vld [vmem:[%s4 + $0x48] sm:$0xf]
  %v1102 = vld [vmem:[%s4 + $0x4c] sm:$0xf]
  %v1103 = vld [vmem:[%s4 + $0x50] sm:$0xf]
  %v1104 = vld [vmem:[%s4 + $0x54] sm:$0xf]
  %v1105 = vld [vmem:[%s4 + $0x58] sm:$0xf]
  %v1106 = vld [vmem:[%s4 + $0x5c] sm:$0xf]
  %v1107 = vld [vmem:[%s4 + $0x60] sm:$0xf]
  %v1108 = vld [vmem:[%s4 + $0x64] sm:$0xf]
  %v1109 = vld [vmem:[%s4 + $0x68] sm:$0xf]
  %v1110 = vld [vmem:[%s4 + $0x6c] sm:$0xf]
  %v1111 = vld [vmem:[%s4 + $0x70] sm:$0xf]
  %v1112 = vld [vmem:[%s4 + $0x74] sm:$0xf]
  %v1113 = vld [vmem:[%s4 + $0x78] sm:$0xf]
  %v1114 = vld [vmem:[%s4 + $0x7c] sm:$0xf]
  %v1115 = vld [vmem:[%s4 + $0x80] sm:$0xf]
  %v1116 = vld [vmem:[%s4 + $0x84] sm:$0xf]
  %v1117 = vld [vmem:[%s4 + $0x88] sm:$0xf]
  %v1118 = vld [vmem:[%s4 + $0x8c] sm:$0xf]
  %v1119 = vld [vmem:[%s4 + $0x90] sm:$0xf]
  %v1120 = vld [vmem:[%s4 + $0x94] sm:$0xf]
  %v1121 = vld [vmem:[%s5] sm:$0xff]
  %1123 = vset.pattern.permute.xlu0 0
  %1124 = vperm.xlu0 %1123, %v1121
  %v1125 = vpop.permute.xlu0 %1124
  %v1165 = vunpack.c.l.b16 %v1083
  %v1166 = vunpack.c.l.b16 %v1084
  %v1167 = vunpack.c.l.b16 %v1085
  %v1168 = vunpack.c.l.b16 %v1086
  %v1169 = vunpack.c.l.b16 %v1087
  %v1170 = vunpack.c.l.b16 %v1088
  %v1171 = vunpack.c.l.b16 %v1089
  %v1172 = vunpack.c.l.b16 %v1090
  %v1173 = vunpack.c.l.b16 %v1091
  %v1174 = vunpack.c.l.b16 %v1092
  %v1175 = vunpack.c.l.b16 %v1093
  %v1176 = vunpack.c.l.b16 %v1094
  %v1177 = vunpack.c.l.b16 %v1095
  %v1178 = vunpack.c.l.b16 %v1096
  %v1179 = vunpack.c.l.b16 %v1097
  %v1180 = vunpack.c.l.b16 %v1098
  %v1181 = vunpack.c.l.b16 %v1099
  %v1182 = vunpack.c.l.b16 %v1100
  %v1183 = vunpack.c.l.b16 %v1101
  %v1184 = vunpack.c.l.b16 %v1102
  %v1185 = vunpack.c.l.b16 %v1103
  %v1186 = vunpack.c.l.b16 %v1104
  %v1187 = vunpack.c.l.b16 %v1105
  %v1188 = vunpack.c.l.b16 %v1106
  %v1189 = vunpack.c.l.b16 %v1107
  %v1190 = vunpack.c.l.b16 %v1108
  %v1191 = vunpack.c.l.b16 %v1109
  %v1192 = vunpack.c.l.b16 %v1110
  %v1193 = vunpack.c.l.b16 %v1111
  %v1194 = vunpack.c.l.b16 %v1112
  %v1195 = vunpack.c.l.b16 %v1113
  %v1196 = vunpack.c.l.b16 %v1114
  %v1197 = vunpack.c.l.b16 %v1115
  %v1198 = vunpack.c.l.b16 %v1116
  %v1199 = vunpack.c.l.b16 %v1117
  %v1200 = vunpack.c.l.b16 %v1118
  %v1201 = vunpack.c.l.b16 %v1119
  %v1202 = vunpack.c.l.b16 %v1120
  %v1203 = vpack.c.b16 %v1166, %v1165
  %v1204 = vpack.c.b16 %v1168, %v1167
  %v1205 = vpack.c.b16 %v1170, %v1169
  %v1206 = vpack.c.b16 %v1172, %v1171
  %v1207 = vpack.c.b16 %v1174, %v1173
  %v1208 = vpack.c.b16 %v1176, %v1175
  %v1209 = vpack.c.b16 %v1178, %v1177
  %v1210 = vpack.c.b16 %v1180, %v1179
  %v1211 = vpack.c.b16 %v1182, %v1181
  %v1212 = vpack.c.b16 %v1184, %v1183
  %v1213 = vpack.c.b16 %v1186, %v1185
  %v1214 = vpack.c.b16 %v1188, %v1187
  %v1215 = vpack.c.b16 %v1190, %v1189
  %v1216 = vpack.c.b16 %v1192, %v1191
  %v1217 = vpack.c.b16 %v1194, %v1193
  %v1218 = vpack.c.b16 %v1196, %v1195
  %v1219 = vpack.c.b16 %v1198, %v1197
  %v1220 = vpack.c.b16 %v1200, %v1199
  %v1221 = vpack.c.b16 %v1202, %v1201
  %vm1241 = vcmask 392192
  %v1243 = vsel %vm1241, %v1082, 0
  %1245 = vmatprep.subr.bf16.mxu0 0
  %1246 = vmatpush1.bf16.msra.mxu0 %v1210
  %1247 = vmatprep.subr.bf16.mxu0 0
  %1248 = vmatpush1.bf16.msra.mxu0 %v1209
  %1249 = vmatprep.subr.bf16.mxu0 0
  %1250 = vmatpush1.bf16.msra.mxu0 %v1208
  %1251 = vmatprep.subr.bf16.mxu0 0
  %1252 = vmatpush1.bf16.msra.mxu0 %v1207
  %1253 = vmatprep.subr.bf16.mxu0 0
  %1254 = vmatpush1.bf16.msra.mxu0 %v1206
  %1255 = vmatprep.subr.bf16.mxu0 0
  %1256 = vmatpush1.bf16.msra.mxu0 %v1205
  %1257 = vmatprep.subr.bf16.mxu0 0
  %1258 = vmatpush1.bf16.msra.mxu0 %v1204
  %1259 = vmatprep.subr.bf16.mxu0 0
  %1260 = vmatpush1.bf16.msra.mxu0 %v1203
  %1261 = vmatprep.subr.bf16.mxu0 0
  %1262 = vmatpush2.bf16.msra.mxu0 %v1218
  %1263 = vmatprep.subr.bf16.mxu0 0
  %1264 = vmatpush2.bf16.msra.mxu0 %v1217
  %1265 = vmatprep.subr.bf16.mxu0 0
  %1266 = vmatpush2.bf16.msra.mxu0 %v1216
  %1267 = vmatprep.subr.bf16.mxu0 0
  %1268 = vmatpush2.bf16.msra.mxu0 %v1215
  %1269 = vmatprep.subr.bf16.mxu0 0
  %1270 = vmatpush2.bf16.msra.mxu0 %v1214
  %1271 = vmatprep.subr.bf16.mxu0 0
  %1272 = vmatpush2.bf16.msra.mxu0 %v1213
  %1273 = vmatprep.subr.bf16.mxu0 0
  %1274 = vmatpush2.bf16.msra.mxu0 %v1212
  %1275 = vmatprep.subr.bf16.mxu0 0
  %1276 = vmatpush2.bf16.msra.mxu0 %v1211
  %1277 = vmatprep.mubr.bf16.mxu0 %v1081
  %1278 = vmatmul.mubr.bf16.gmra.mxu0 %v1080
  %v1279 = vpop.f32.mrf.mxu0
  %v1280 = vadd.f32 %v1125, %v1279
  %v1281 = vpop.f32.mrf.mxu0
  %v1282 = vpop.f32.mrf.mxu0
  %v1283 = vpop.f32.mrf.mxu0
  %1284 = vdwg.mxu0
  %1285 = vmatprep.subr.bf16.mxu0 0
  %1286 = vmatpush1.bf16.msra.mxu0 0
  %1287 = vmatprep.subr.bf16.mxu0 0
  %1288 = vmatpush1.bf16.msra.mxu0 0
  %1289 = vmatprep.subr.bf16.mxu0 0
  %1290 = vmatpush1.bf16.msra.mxu0 0
  %1291 = vmatprep.subr.bf16.mxu0 0
  %1292 = vmatpush1.bf16.msra.mxu0 0
  %1293 = vmatprep.subr.bf16.mxu0 0
  %1294 = vmatpush1.bf16.msra.mxu0 0
  %1295 = vmatprep.subr.bf16.mxu0 0
  %1296 = vmatpush1.bf16.msra.mxu0 %v1221
  %1297 = vmatprep.subr.bf16.mxu0 0
  %1298 = vmatpush1.bf16.msra.mxu0 %v1220
  %1299 = vmatprep.subr.bf16.mxu0 0
  %1300 = vmatpush1.bf16.msra.mxu0 %v1219
  %1301 = vmatprep.subr.bf16.mxu0 0
  %1302 = vmatpush2.bf16.msra.mxu0 0
  %1303 = vmatprep.subr.bf16.mxu0 0
  %1304 = vmatpush2.bf16.msra.mxu0 0
  %1305 = vmatprep.subr.bf16.mxu0 0
  %1306 = vmatpush2.bf16.msra.mxu0 0
  %1307 = vmatprep.subr.bf16.mxu0 0
  %1308 = vmatpush2.bf16.msra.mxu0 0
  %1309 = vmatprep.subr.bf16.mxu0 0
  %1310 = vmatpush2.bf16.msra.mxu0 0
  %1311 = vmatprep.subr.bf16.mxu0 0
  %1312 = vmatpush2.bf16.msra.mxu0 0
  %1313 = vmatprep.subr.bf16.mxu0 0
  %1314 = vmatpush2.bf16.msra.mxu0 0
  %1315 = vmatprep.subr.bf16.mxu0 0
  %1316 = vmatpush2.bf16.msra.mxu0 0
  %1317 = vmatprep.mubr.bf16.mxu0 0
  %1318 = vmatmul.mubr.bf16.gmra.mxu0 %v1243
  %v1319 = vpop.f32.mrf.mxu0
  %v1320 = vadd.f32 %v1280, %v1319
  %v1321 = vpop.f32.mrf.mxu0
  %v1322 = vpop.f32.mrf.mxu0
  %v1323 = vpop.f32.mrf.mxu0
  %1324 = vdwg.mxu0
  %vm1325 = vcmp.gt.f32.partialorder %v1320, 0.0
  %v1326 = vmul.f32 %v1320, 0.01
  %v1327 = vsel %vm1325, %v1320, %v1326
  %1329 = vrot.lane.b32.xlu0 %v1327, 126
  %v1330 = vpop.permute.xlu0 %1329
  %1332 = vrot.lane.b32.xlu0 %v1327, 124
  %v1333 = vpop.permute.xlu0 %1332
  %1335 = vrot.lane.b32.xlu0 %v1327, 122
  %v1336 = vpop.permute.xlu0 %1335
  %1338 = vrot.lane.b32.xlu0 %v1327, 120
  %v1339 = vpop.permute.xlu0 %1338
  %1341 = vrot.lane.b32.xlu0 %v1327, 118
  %v1342 = vpop.permute.xlu0 %1341
  %1344 = vrot.lane.b32.xlu0 %v1327, 116
  %v1345 = vpop.permute.xlu0 %1344
  %1347 = vrot.lane.b32.xlu0 %v1327, 114
  %v1348 = vpop.permute.xlu0 %1347
  %v1350 = vld [vmem:[%s6] sm:$0xf]
  %v1351 = vld [vmem:[%s6 + $0x4] sm:$0xf]
  %v1352 = vld [vmem:[%s6 + $0x8] sm:$0xf]
  %v1353 = vld [vmem:[%s6 + $0xc] sm:$0xf]
  %v1354 = vld [vmem:[%s6 + $0x10] sm:$0x1]
  %v1355 = vpack.c.bf16 %v1330, %v1327
  %v1356 = vpack.c.bf16 %v1336, %v1333
  %v1357 = vpack.c.bf16 %v1342, %v1339
  %v1358 = vpack.c.bf16 %v1348, %v1345
  %v1359 = vld [vmem:[%s7] sm:$0xff]
  %v1360 = vld [vmem:[%s7 + $0x8] sm:$0xff]
  %v1361 = vld [vmem:[%s7 + $0x10] sm:$0xff]
  %v1362 = vld [vmem:[%s7 + $0x18] sm:$0xff]
  %v1363 = vld [vmem:[%s7 + $0x20] sm:$0x1]
  %1365 = vset.pattern.permute.xlu0 0
  %1366 = vperm.xlu0 %1365, %v1359
  %v1367 = vpop.permute.xlu0 %1366
  %1370 = vset.pattern.permute.xlu0 0
  %1371 = vperm.xlu0 %1370, %v1360
  %v1372 = vpop.permute.xlu0 %1371
  %1375 = vset.pattern.permute.xlu0 0
  %1376 = vperm.xlu0 %1375, %v1361
  %v1377 = vpop.permute.xlu0 %1376
  %1380 = vset.pattern.permute.xlu0 0
  %1381 = vperm.xlu0 %1380, %v1362
  %v1382 = vpop.permute.xlu0 %1381
  %1385 = vset.pattern.permute.xlu0 0
  %1386 = vperm.xlu0 %1385, %v1363
  %v1387 = vpop.permute.xlu0 %1386
  %v1394 = vunpack.c.l.b16 %v1350
  %v1395 = vunpack.c.l.b16 %v1351
  %v1396 = vunpack.c.l.b16 %v1352
  %v1397 = vunpack.c.l.b16 %v1353
  %v1398 = vunpack.c.l.b16 %v1354
  %v1399 = vpack.c.b16 %v1395, %v1394
  %v1400 = vpack.c.b16 %v1397, %v1396
  %v1401 = vpack.c.b16 %v1398, %v1398
  %vm1402 = vcmask 523264
  %v1404 = vsel %vm1402, %v1399, 0
  %v1407 = vsel %vm1402, %v1400, 0
  %v1410 = vsel %vm1402, %v1401, 0
  %1412 = vmatprep.subr.bf16.mxu0 0
  %1413 = vmatpush1.bf16.msra.mxu0 0
  %1414 = vmatprep.subr.bf16.mxu0 0
  %1415 = vmatpush1.bf16.msra.mxu0 0
  %1416 = vmatprep.subr.bf16.mxu0 0
  %1417 = vmatpush1.bf16.msra.mxu0 0
  %1418 = vmatprep.subr.bf16.mxu0 0
  %1419 = vmatpush1.bf16.msra.mxu0 0
  %1420 = vmatprep.subr.bf16.mxu0 0
  %1421 = vmatpush1.bf16.msra.mxu0 %v1358
  %1422 = vmatprep.subr.bf16.mxu0 0
  %1423 = vmatpush1.bf16.msra.mxu0 %v1357
  %1424 = vmatprep.subr.bf16.mxu0 0
  %1425 = vmatpush1.bf16.msra.mxu0 %v1356
  %1426 = vmatprep.subr.bf16.mxu0 0
  %1427 = vmatpush1.bf16.msra.mxu0 %v1355
  %1428 = vmatprep.subr.bf16.mxu0 0
  %1429 = vmatpush2.bf16.msra.mxu0 0
  %1430 = vmatprep.subr.bf16.mxu0 0
  %1431 = vmatpush2.bf16.msra.mxu0 0
  %1432 = vmatprep.subr.bf16.mxu0 0
  %1433 = vmatpush2.bf16.msra.mxu0 0
  %1434 = vmatprep.subr.bf16.mxu0 0
  %1435 = vmatpush2.bf16.msra.mxu0 0
  %1436 = vmatprep.subr.bf16.mxu0 0
  %1437 = vmatpush2.bf16.msra.mxu0 0
  %1438 = vmatprep.subr.bf16.mxu0 0
  %1439 = vmatpush2.bf16.msra.mxu0 0
  %1440 = vmatprep.subr.bf16.mxu0 0
  %1441 = vmatpush2.bf16.msra.mxu0 0
  %1442 = vmatprep.subr.bf16.mxu0 0
  %1443 = vmatpush2.bf16.msra.mxu0 0
  %1444 = vmatprep.mubr.bf16.mxu0 0
  %1445 = vmatmul.mubr.bf16.gmra.mxu0 %v1404
  %v1446 = vpop.f32.mrf.mxu0
  %v1447 = vadd.f32 %v1367, %v1446
  %v1448 = vpop.f32.mrf.mxu0
  %v1449 = vpop.f32.mrf.mxu0
  %v1450 = vadd.f32 %v1372, %v1449
  %v1451 = vpop.f32.mrf.mxu0
  %1452 = vmatprep.mubr.bf16.mxu0 0
  %1453 = vmatmul.mubr.bf16.gmra.mxu0 %v1407
  %v1454 = vpop.f32.mrf.mxu0
  %v1455 = vadd.f32 %v1377, %v1454
  %v1456 = vpop.f32.mrf.mxu0
  %v1457 = vpop.f32.mrf.mxu0
  %v1458 = vadd.f32 %v1382, %v1457
  %v1459 = vpop.f32.mrf.mxu0
  %1460 = vmatprep.mubr.bf16.mxu0 0
  %1461 = vmatmul.mubr.bf16.gmra.mxu0 %v1410
  %v1462 = vpop.f32.mrf.mxu0
  %v1463 = vadd.f32 %v1387, %v1462
  %v1464 = vpop.f32.mrf.mxu0
  %v1465 = vpop.f32.mrf.mxu0
  %v1466 = vpop.f32.mrf.mxu0
  %1467 = vdwg.mxu0
  %vm1468 = vcmp.gt.f32.partialorder %v1447, 0.0
  %vm1469 = vcmp.gt.f32.partialorder %v1450, 0.0
  %vm1470 = vcmp.gt.f32.partialorder %v1455, 0.0
  %vm1471 = vcmp.gt.f32.partialorder %v1458, 0.0
  %vm1472 = vcmp.gt.f32.partialorder %v1463, 0.0
  %v1473 = vmul.f32 %v1447, 0.01
  %v1474 = vmul.f32 %v1450, 0.01
  %v1475 = vmul.f32 %v1455, 0.01
  %v1476 = vmul.f32 %v1458, 0.01
  %v1477 = vmul.f32 %v1463, 0.01
  %v1478 = vsel %vm1468, %v1447, %v1473
  %v1479 = vsel %vm1469, %v1450, %v1474
  %v1480 = vsel %vm1470, %v1455, %v1475
  %v1481 = vsel %vm1471, %v1458, %v1476
  %v1482 = vsel %vm1472, %v1463, %v1477
  %v1483 = vld [vmem:[%s8] sm:$0xff]
  %v1484 = vld [vmem:[%s8 + $0x8] sm:$0xff]
  %v1485 = vld [vmem:[%s8 + $0x10] sm:$0xff]
  %v1486 = vld [vmem:[%s8 + $0x18] sm:$0xff]
  %v1487 = vld [vmem:[%s8 + $0x20] sm:$0x1]
  %1489 = vset.pattern.permute.xlu0 0
  %1490 = vperm.xlu0 %1489, %v1483
  %v1491 = vpop.permute.xlu0 %1490
  %1494 = vset.pattern.permute.xlu0 0
  %1495 = vperm.xlu0 %1494, %v1484
  %v1496 = vpop.permute.xlu0 %1495
  %1499 = vset.pattern.permute.xlu0 0
  %1500 = vperm.xlu0 %1499, %v1485
  %v1501 = vpop.permute.xlu0 %1500
  %1504 = vset.pattern.permute.xlu0 0
  %1505 = vperm.xlu0 %1504, %v1486
  %v1506 = vpop.permute.xlu0 %1505
  %1509 = vset.pattern.permute.xlu0 0
  %1510 = vperm.xlu0 %1509, %v1487
  %v1511 = vpop.permute.xlu0 %1510
  %v1513 = vmul.f32 %v1478, %v1491
  %v1514 = vmul.f32 %v1479, %v1496
  %v1515 = vmul.f32 %v1480, %v1501
  %v1516 = vmul.f32 %v1481, %v1506
  %v1517 = vmul.f32 %v1482, %v1511
  %vm1518 = vcmask 15360
  %v1519 = vsel %vm1518, %v1513, 0.0
  %vm1520 = vcmask 10240
  %v1521 = vsel %vm1520, %v1514, 0.0
  %v1522 = vadd.f32 %v1519, %v1521
  %v1523 = vrot.slane %v1522, 4
  %v1524 = vadd.f32 %v1522, %v1523
  %v1525 = vrot.slane %v1524, 2
  %v1526 = vadd.f32 %v1524, %v1525
  %v1527 = vrot.slane %v1526, 1
  %v1528 = vadd.f32 %v1526, %v1527
  %vm1531 = vcmask 1044480
  %v1532 = vrot.slane %v1514, 3
  %v1533 = vrot.slane %v1515, 3
  %v1534 = vsel %vm1531, %v1532, %v1533
  %v1537 = vsel %vm1518, %v1534, 0.0
  %v1538 = vsel %vm1520, %v1533, 0.0
  %v1539 = vadd.f32 %v1537, %v1538
  %v1540 = vrot.slane %v1539, 4
  %v1541 = vadd.f32 %v1539, %v1540
  %v1542 = vrot.slane %v1541, 2
  %v1543 = vadd.f32 %v1541, %v1542
  %v1544 = vrot.slane %v1543, 1
  %v1545 = vadd.f32 %v1543, %v1544
  %v1548 = vrot.slane %v1515, 6
  %v1549 = vrot.slane %v1516, 6
  %v1550 = vsel %vm206, %v1548, %v1549
  %v1551 = vrot.slane %v1517, 6
  %v1552 = vsel %vm206, %v1549, %v1551
  %v1555 = vsel %vm1518, %v1550, 0.0
  %v1556 = vsel %vm1520, %v1552, 0.0
  %v1557 = vadd.f32 %v1555, %v1556
  %v1558 = vrot.slane %v1557, 4
  %v1559 = vadd.f32 %v1557, %v1558
  %v1560 = vrot.slane %v1559, 2
  %v1561 = vadd.f32 %v1559, %v1560
  %v1562 = vrot.slane %v1561, 1
  %v1563 = vadd.f32 %v1561, %v1562
  %vm1564 = vcmask 1040384
  %v1565 = vsel %vm1564, %v1528, %v1545
  %v1566 = vsel %vm206, %v1565, %v1563
  %v1567 = vld [vmem:[%s9] sm:$0x7]
  %1569 = vset.pattern.permute.xlu0 0
  %1570 = vperm.xlu0 %1569, %v1567
  %v1571 = vpop.permute.xlu0 %1570
  %v1573 = vadd.f32 %v1566, %v1571
  %v1574 = vxor.u32 %v1573, 2147483648
  %v1575 = vmul.f32 %v1574, 1.442695
  %v1576 = vpow.pop %v1575
  %v1577 = vadd.f32 %v1576, 1.0
  %v1578 = vrcp.pop %v1577
  %v1579 = vmul.f32 1.0, %v1578
  %1580 = vst.msk [vmem:[%s10] sm:$0x7] %vm1520, %v1579
  // Predicated region
  $region42: #{tpu_custom_call.1} parent=0 // pred_check
    _
  $region43: #{tpu_custom_call.1} parent=0 // pred_check_branch
    %1582 = sbr.rel (0) target = $region45
  $region44: #{tpu_custom_call.1} parent=0 // pred_region
    _
  $region45: #{tpu_custom_call.1} parent=0 // pred_fallthru
    _
  // Predicated region
  $region46: #{tpu_custom_call.1} parent=0 // pred_check
    _
  $region47: #{tpu_custom_call.1} parent=0 // pred_check_branch
    %1584 = sbr.rel (0) target = $region49
  $region48: #{tpu_custom_call.1} parent=0 // pred_region
    _
  $region49: #{tpu_custom_call.1} parent=0 // pred_fallthru
    _

</llo_original>
